<compile_context>
chip_gen: v7x
topology: tpu7x:2x2x1
jax: 0.10.0
libtpu: 0.0.40
codegen_flags: <defaults>
</compile_context>

<pallas_src>
import functools

import numpy as np
import jax
import jax.numpy as jnp
from jax.experimental import pallas as pl
from jax.experimental.pallas import tpu as pltpu

# ----------------------------------------------------------------------------
# Static band layout (from the PyTorch module) and the 128-wide group packing.
# ----------------------------------------------------------------------------
BANDS = [2, 3, 3, 3, 3, 3, 3, 3, 3, 3, 3,
         8, 8, 8, 8, 8, 8, 8, 8, 8, 8, 8, 8,
         16, 16, 16, 16, 16, 16, 16, 17]
N_BANDS = len(BANDS)                  # 31
F_TOTAL = sum(BANDS)                  # 257
EPS = 1e-5                            # nn.GroupNorm default eps

# Consecutive bands grouped so each group spans <= 128 packed columns and
# starts on a 128-column boundary of the flat (2*freq + re/im) axis.
GROUP_BANDS = ((0, 15), (15, 23), (23, 27), (27, 30), (30, 31))
N_GROUPS = len(GROUP_BANDS)           # 5
GROUP_W = 128                         # packed columns per group (lane-dense)
N_COLS = N_GROUPS * GROUP_W           # 640

_starts = []
_hz = 0
for _b in BANDS:
    _starts.append(2 * _hz)
    _hz += _b
LAST_START_ORIG = _starts[-1]         # 480: natural flat offset of band 30
LAST_W = 2 * BANDS[-1]                # 34
GROUP4_COL0 = 4 * GROUP_W             # 512: packed offset of band 30 (duplicated)
PACKED_START = _starts[:-1] + [GROUP4_COL0]

GROUP_OF_BAND = np.zeros((N_BANDS,), np.int64)
for _g, (_s, _e) in enumerate(GROUP_BANDS):
    GROUP_OF_BAND[_s:_e] = _g

WIDTHS_NP = np.array([2 * b for b in BANDS], np.float32)     # [31]
SEL_NP = np.zeros((N_COLS, N_BANDS), np.float32)             # packed col -> band
COL2BAND_NP = np.zeros((N_COLS,), np.int32)
for _i, _b in enumerate(BANDS):
    _c0 = PACKED_START[_i]
    SEL_NP[_c0:_c0 + 2 * _b, _i] = 1.0
    COL2BAND_NP[_c0:_c0 + 2 * _b] = _i

# Packing invariants (perf-review correctness concern #3): every band lives
# inside its group's 128-column window; no packed column is shared.
for _i, _b in enumerate(BANDS):
    _g = int(GROUP_OF_BAND[_i])
    assert GROUP_W * _g <= PACKED_START[_i]
    assert PACKED_START[_i] + 2 * _b <= GROUP_W * (_g + 1)
assert float(SEL_NP.sum(axis=1).max()) <= 1.0


# ----------------------------------------------------------------------------
# Kernels
# ----------------------------------------------------------------------------
def _stats_kernel(x_ref, sel_ref, selt_ref, invcnt_ref, out_ref, acc_ref):
    """Per-(batch, band) GroupNorm stats, accumulated across T tiles.

    x_ref     : (t_tile, 640)  packed band features (bf16/f32)
    sel_ref   : (640, 31)      packed column -> band fold (0/1)
    selt_ref  : (31, 640)      band -> packed column broadcast (0/1)
    invcnt_ref: (2, 31)        row0 = 1/(width*t_tile), row1 = 1/(width*T)
    out_ref   : (2, 31)        row0 = mean, row1 = 1/sqrt(var+eps)  (per batch)
    acc_ref   : (3, 31) VMEM   rows: sum S, tile-centered M2, Q = sum_t^2/n
    """
    ti = pl.program_id(1)

    @pl.when(ti == 0)
    def _init():
        acc_ref[...] = jnp.zeros_like(acc_ref)

    x = x_ref[...].astype(jnp.float32)                              # [t, 640]
    sel = sel_ref[...]
    inv_n_tile = invcnt_ref[0:1, :]                                 # [1, 31]

    col_sum = jnp.sum(x, axis=0, keepdims=True)                     # [1, 640]
    sum_b = jnp.dot(col_sum, sel, preferred_element_type=jnp.float32)   # [1,31]
    mean_b = sum_b * inv_n_tile
    # Mean-shifted (per-tile centered) second moment -> no catastrophic
    # cancellation when combining tiles.
    mean_c = jnp.dot(mean_b, selt_ref[...],
                     preferred_element_type=jnp.float32)            # [1, 640]
    xc = x - mean_c
    m2_c = jnp.sum(xc * xc, axis=0, keepdims=True)                  # [1, 640]
    m2_b = jnp.dot(m2_c, sel, preferred_element_type=jnp.float32)   # [1, 31]
    q_b = sum_b * sum_b * inv_n_tile                                # sum_t^2 / n

    acc_ref[...] = acc_ref[...] + jnp.concatenate([sum_b, m2_b, q_b], axis=0)

    @pl.when(ti == pl.num_programs(1) - 1)
    def _finalize():
        inv_n = invcnt_ref[1:2, :]                                  # 1/(w*T)
        acc = acc_ref[...]
        s, m2, q = acc[0:1, :], acc[1:2, :], acc[2:3, :]
        mean = s * inv_n
        # exact combination:  sum (x-mean)^2 = sum M2_t + Q - S^2/N
        var = jnp.maximum((m2 + q - s * s * inv_n) * inv_n, 0.0)
        inv_std = jax.lax.rsqrt(var + EPS)
        out_ref[...] = jnp.concatenate([mean, inv_std], axis=0)


def _bandsplit_kernel(x_ref, ss_ref, w0_ref, w1_ref, w2_ref, w3_ref, w4_ref,
                      bias_ref, o_ref):
    """Normalize + block-diagonal Linear for one (batch, T-tile) block.

    x_ref   : (t_tile, 640)   packed band features (bf16/f32)
    ss_ref  : (2, 640)        row0 = per-column scale, row1 = shift (f32)
    w*_ref  : (128, nb_g * C) per-group block-diagonal Linear weights
    bias_ref: (1, 31 * C)     packed Linear bias
    o_ref   : (t_tile, 31*C)  band-major output tile (f32)
    """
    w_refs = (w0_ref, w1_ref, w2_ref, w3_ref, w4_ref)
    scale = ss_ref[0:1, :]
    shift = ss_ref[1:2, :]
    # GroupNorm folded into one multiply-add; scale/shift are exactly zero on
    # dead/duplicated/padded columns, so those lanes contribute nothing.
    y = (x_ref[...].astype(jnp.float32) * scale + shift).astype(w0_ref.dtype)

    outs = []
    for g in range(N_GROUPS):                         # static unroll (no w[g])
        yg = y[:, g * GROUP_W:(g + 1) * GROUP_W]      # [t_tile, 128]
        outs.append(jnp.dot(yg, w_refs[g][...],
                            preferred_element_type=jnp.float32))
    o_ref[...] = jnp.concatenate(outs, axis=-1) + bias_ref[...]


# ----------------------------------------------------------------------------
# Wrapper
# ----------------------------------------------------------------------------
def _pick_t_tile(t):
    for cand in (512, 256, 128, 64, 32, 16, 8):
        if cand <= t and t % cand == 0:
            return cand
    return t


@functools.partial(jax.jit, static_argnames=("channels", "t_tile", "compute_dtype"))
def bandsplit_forward(x, gamma_cols, beta_cols, w_blocks, bias_packed, *,
                      channels, t_tile=None, compute_dtype=jnp.bfloat16):
    """x: [B, 257, T, 2] -> packed z: [B, T, 31, channels] (band-major).

    Same math as BandSplit.forward; the PyTorch module returns the
    [B, T, channels, 31] view — use to_module_layout() for that layout.
    """
    b, f, t, two = x.shape
    assert f == F_TOTAL and two == 2
    if t_tile is None:
        t_tile = _pick_t_tile(t)
    if t % t_tile != 0:
        raise ValueError(f"T={t} must be a multiple of t_tile={t_tile}")
    nt = t // t_tile
    out_cols = N_BANDS * channels

    # Single layout pass: [B,F,T,2] -> [B,T,2F] (the module's own transpose),
    # plus the 34-column tail duplication that 128-aligns the last group, and
    # the cast to the streaming dtype.  No gather, no per-band repack.
    xt = jnp.transpose(x, (0, 2, 1, 3)).reshape(b, t, 2 * F_TOTAL)
    zpad = jnp.zeros((b, t, N_COLS - GROUP4_COL0 - LAST_W), xt.dtype)
    x_flat = jnp.concatenate(
        [xt[..., :GROUP4_COL0],
         xt[..., LAST_START_ORIG:LAST_START_ORIG + LAST_W],
         zpad], axis=-1).astype(compute_dtype)                       # [B,T,640]

    sel = jnp.asarray(SEL_NP)
    sel_t = jnp.asarray(np.ascontiguousarray(SEL_NP.T))
    widths = jnp.asarray(WIDTHS_NP)
    invcnt = jnp.stack([1.0 / (widths * t_tile), 1.0 / (widths * t)], axis=0)

    # Pass 1: GroupNorm statistics (accumulated across T tiles).
    stats = pl.pallas_call(
        _stats_kernel,
        out_shape=jax.ShapeDtypeStruct((b, 2, N_BANDS), jnp.float32),
        grid=(b, nt),
        in_specs=[
            pl.BlockSpec((None, t_tile, N_COLS), lambda bi, ti: (bi, ti, 0)),
            pl.BlockSpec((N_COLS, N_BANDS), lambda bi, ti: (0, 0)),
            pl.BlockSpec((N_BANDS, N_COLS), lambda bi, ti: (0, 0)),
            pl.BlockSpec((2, N_BANDS), lambda bi, ti: (0, 0)),
        ],
        out_specs=pl.BlockSpec((None, 2, N_BANDS), lambda bi, ti: (bi, 0, 0)),
        scratch_shapes=[pltpu.VMEM((3, N_BANDS), jnp.float32)],
        compiler_params=pltpu.CompilerParams(
            dimension_semantics=("parallel", "arbitrary")),
    )(x_flat, sel, sel_t, invcnt)

    # Fold the GroupNorm affine into per-column scale/shift (tiny, exact).
    col2band = jnp.asarray(COL2BAND_NP)
    mean_c = jnp.take(stats[:, 0, :], col2band, axis=1)              # [B, 640]
    inv_c = jnp.take(stats[:, 1, :], col2band, axis=1)
    scale = inv_c * gamma_cols[None, :]                              # 0 on dead cols
    shift = beta_cols[None, :] - mean_c * scale
    ss = jnp.stack([scale, shift], axis=1)                           # [B, 2, 640]

    w_cast = tuple(w.astype(compute_dtype) for w in w_blocks)
    bias_2d = bias_packed.reshape(1, out_cols)

    # Pass 2: normalize + block-diagonal Linear; fully parallel over (B, Tt).
    out = pl.pallas_call(
        _bandsplit_kernel,
        out_shape=jax.ShapeDtypeStruct((b, t, out_cols), jnp.float32),
        grid=(b, nt),
        in_specs=[
            pl.BlockSpec((None, t_tile, N_COLS), lambda bi, ti: (bi, ti, 0)),
            pl.BlockSpec((None, 2, N_COLS), lambda bi, ti: (bi, 0, 0)),
            *[pl.BlockSpec(w.shape, lambda bi, ti: (0, 0)) for w in w_cast],
            pl.BlockSpec((1, out_cols), lambda bi, ti: (0, 0)),
        ],
        out_specs=pl.BlockSpec((None, t_tile, out_cols),
                               lambda bi, ti: (bi, ti, 0)),
        compiler_params=pltpu.CompilerParams(
            dimension_semantics=("parallel", "parallel")),
    )(x_flat, ss, *w_cast, bias_2d)

    # Packed band-major output; reshape only (no extra HBM pass).
    return out.reshape(b, t, N_BANDS, channels)


def to_module_layout(z_packed):
    """[B, T, 31, C] -> [B, T, C, 31] (the PyTorch BandSplit output layout)."""
    return jnp.transpose(z_packed, (0, 1, 3, 2))


# ----------------------------------------------------------------------------
# Parameters, packing, reference
# ----------------------------------------------------------------------------
def init_band_params(key, channels):
    gammas, betas, ws, bs = [], [], [], []
    for band in BANDS:
        w_in = 2 * band
        key, kg, kb, kw, kbi = jax.random.split(key, 5)
        gammas.append(1.0 + 0.1 * jax.random.normal(kg, (w_in,), jnp.float32))
        betas.append(0.1 * jax.random.normal(kb, (w_in,), jnp.float32))
        lim = 1.0 / float(np.sqrt(w_in))
        ws.append(jax.random.uniform(kw, (w_in, channels), jnp.float32, -lim, lim))
        bs.append(jax.random.uniform(kbi, (channels,), jnp.float32, -lim, lim))
    return gammas, betas, ws, bs


def pack_params(gammas, betas, ws, bs, channels):
    """Per-band params -> packed columns / per-group block-diagonal weights."""
    gamma_cols = np.zeros((N_COLS,), np.float32)
    beta_cols = np.zeros((N_COLS,), np.float32)
    w_blocks = [np.zeros((GROUP_W, (e - s) * channels), np.float32)
                for s, e in GROUP_BANDS]
    bias = np.zeros((N_BANDS * channels,), np.float32)
    for i, band in enumerate(BANDS):
        w_in = 2 * band
        c0 = PACKED_START[i]
        g = int(GROUP_OF_BAND[i])
        r0 = c0 - GROUP_W * g
        l = i - GROUP_BANDS[g][0]
        gamma_cols[c0:c0 + w_in] = np.asarray(gammas[i])
        beta_cols[c0:c0 + w_in] = np.asarray(betas[i])
        w_blocks[g][r0:r0 + w_in, l * channels:(l + 1) * channels] = np.asarray(ws[i])
        bias[i * channels:(i + 1) * channels] = np.asarray(bs[i])
    return (jnp.asarray(gamma_cols), jnp.asarray(beta_cols),
            tuple(jnp.asarray(w) for w in w_blocks), jnp.asarray(bias))


def reference_forward(x, gammas, betas, ws, bs):
    """Pure-JAX mirror of the PyTorch BandSplit forward (per-band loop)."""
    b, _, t, _ = x.shape
    xt = jnp.transpose(x, (0, 2, 1, 3))                      # [B, T, F, 2]
    outs = []
    hz = 0
    for i, band in enumerate(BANDS):
        xb = xt[:, :, hz:hz + band, :].reshape(b, t, 2 * band)
        mean = jnp.mean(xb, axis=(1, 2), keepdims=True)
        var = jnp.mean((xb - mean) ** 2, axis=(1, 2), keepdims=True)
        xn = (xb - mean) / jnp.sqrt(var + EPS) * gammas[i] + betas[i]
        out = jnp.dot(xn, ws[i], precision=jax.lax.Precision.HIGHEST) + bs[i]
        outs.append(out)
        hz += band
    return jnp.stack(outs, axis=3)                           # [B, T, C, 31]


# ----------------------------------------------------------------------------
# Test
# ----------------------------------------------------------------------------
if __name__ == "__main__":
    B, T, CHANNELS = 2, 16, 32
    T_TILE = 8                      # 2 T tiles -> exercises stats accumulation

    key = jax.random.PRNGKey(0)
    kx, kp = jax.random.split(key)
    x = jax.random.normal(kx, (B, F_TOTAL, T, 2), jnp.float32)
    gammas, betas, ws, bs = init_band_params(kp, CHANNELS)
    gamma_cols, beta_cols, w_blocks, bias_packed = pack_params(
        gammas, betas, ws, bs, CHANNELS)

    z_ref = reference_forward(x, gammas, betas, ws, bs)        # [B, T, C, 31]

    # f32 path: structural / math check.
    z32 = bandsplit_forward(x, gamma_cols, beta_cols, w_blocks, bias_packed,
                            channels=CHANNELS, t_tile=T_TILE,
                            compute_dtype=jnp.float32)
    z32 = jax.block_until_ready(z32)
    assert z32.shape == (B, T, N_BANDS, CHANNELS), z32.shape
    err32 = float(jnp.max(jnp.abs(to_module_layout(z32) - z_ref)))
    assert err32 < 5e-2, f"f32 path max abs err {err32}"

    # bf16 streaming / MXU path (perf default): relaxed tolerance.
    zbf = bandsplit_forward(x, gamma_cols, beta_cols, w_blocks, bias_packed,
                            channels=CHANNELS, t_tile=T_TILE)
    zbf = jax.block_until_ready(zbf)
    assert zbf.shape == (B, T, N_BANDS, CHANNELS), zbf.shape
    errbf = float(jnp.max(jnp.abs(to_module_layout(zbf) - z_ref)))
    assert errbf < 1e-1, f"bf16 path max abs err {errbf}"

    print("KERNEL_OK")
</pallas_src>

<mosaic_0001>
module attributes {stable_mosaic.version = 11 : i64} {
  func.func @_stats_kernel(%arg0: i32, %arg1: i32, %arg2: memref<1x8x640xf32, #tpu.memory_space<vmem>>, %arg3: memref<640x31xf32, #tpu.memory_space<vmem>>, %arg4: memref<31x640xf32, #tpu.memory_space<vmem>>, %arg5: memref<2x31xf32, #tpu.memory_space<vmem>>, %arg6: memref<1x2x31xf32, #tpu.memory_space<vmem>>, %arg7: memref<3x31xf32, #tpu.memory_space<vmem>>) attributes {dimension_semantics = [#tpu.dimension_semantics<parallel>, #tpu.dimension_semantics<arbitrary>], iteration_bounds = array<i64: 2, 2>, scalar_prefetch = 0 : i64, scratch_operands = 1 : i64, tpu.core_type = #tpu.core_type<tc>, window_params = [{transform_indices = @transform_0, window_bounds = array<i64: 1, 8, 640>}, {pipeline_mode = #tpu.pipeline_mode<synchronous>, transform_indices = @transform_1, window_bounds = array<i64: 640, 31>}, {pipeline_mode = #tpu.pipeline_mode<synchronous>, transform_indices = @transform_2, window_bounds = array<i64: 31, 640>}, {pipeline_mode = #tpu.pipeline_mode<synchronous>, transform_indices = @transform_3, window_bounds = array<i64: 2, 31>}, {transform_indices = @transform_4, window_bounds = array<i64: 1, 2, 31>}]} {
    %c0_i32 = arith.constant 0 : i32
    %0 = arith.cmpi eq, %arg1, %c0_i32 : i32
    %1 = arith.extui %0 : i1 to i32
    %c0_i32_0 = arith.constant 0 : i32
    %2 = arith.cmpi ne, %1, %c0_i32_0 : i32
    scf.if %2 {
      %cst_18 = arith.constant 0.000000e+00 : f32
      %28 = vector.broadcast %cst_18 : f32 to vector<3x31xf32>
      %c0_19 = arith.constant 0 : index
      %c0_20 = arith.constant 0 : index
      %29 = vector.load %arg7[%c0_19, %c0_20] : memref<3x31xf32, #tpu.memory_space<vmem>>, vector<3x31xf32>
      tpu.vector_store %arg7[%c0_19, %c0_20], %28 {strides = array<i32>} : memref<3x31xf32, #tpu.memory_space<vmem>>, vector<3x31xf32>,
    } else {
    }
    %c0 = arith.constant 0 : index
    %c0_1 = arith.constant 0 : index
    %c0_2 = arith.constant 0 : index
    %3 = vector.load %arg2[%c0, %c0_1, %c0_2] : memref<1x8x640xf32, #tpu.memory_space<vmem>>, vector<1x8x640xf32>
    %4 = vector.shape_cast %3 : vector<1x8x640xf32> to vector<8x640xf32>
    %c0_3 = arith.constant 0 : index
    %c0_4 = arith.constant 0 : index
    %5 = vector.load %arg3[%c0_3, %c0_4] : memref<640x31xf32, #tpu.memory_space<vmem>>, vector<640x31xf32>
    %c0_5 = arith.constant 0 : index
    %c0_6 = arith.constant 0 : index
    %6 = vector.load %arg5[%c0_5, %c0_6] : memref<2x31xf32, #tpu.memory_space<vmem>>, vector<1x31xf32>
    %cst = arith.constant dense<0.000000e+00> : vector<640xf32>
    %7 = vector.multi_reduction <add>, %4, %cst [0] : vector<8x640xf32> to vector<640xf32>
    %8 = vector.shape_cast %7 : vector<640xf32> to vector<1x640xf32>
    %cst_7 = arith.constant dense<0.000000e+00> : vector<1x31xf32>
    %9 = tpu.matmul %8, %5, %cst_7 {dimension_numbers = #tpu.dot_dimension_numbers<[1], [0], [0], [1], [0, 0, 1, 1], [], []>} : vector<1x640xf32>, vector<640x31xf32>, vector<1x31xf32> -> vector<1x31xf32>
    %10 = arith.mulf %9, %6 : vector<1x31xf32>
    %c0_8 = arith.constant 0 : index
    %c0_9 = arith.constant 0 : index
    %11 = vector.load %arg4[%c0_8, %c0_9] : memref<31x640xf32, #tpu.memory_space<vmem>>, vector<31x640xf32>
    %cst_10 = arith.constant dense<0.000000e+00> : vector<1x640xf32>
    %12 = tpu.matmul %10, %11, %cst_10 {dimension_numbers = #tpu.dot_dimension_numbers<[1], [0], [0], [1], [0, 0, 1, 1], [], []>} : vector<1x31xf32>, vector<31x640xf32>, vector<1x640xf32> -> vector<1x640xf32>
    %13 = vector.broadcast %12 : vector<1x640xf32> to vector<8x640xf32>
    %14 = arith.subf %4, %13 : vector<8x640xf32>
    %15 = arith.mulf %14, %14 : vector<8x640xf32>
    %cst_11 = arith.constant dense<0.000000e+00> : vector<640xf32>
    %16 = vector.multi_reduction <add>, %15, %cst_11 [0] : vector<8x640xf32> to vector<640xf32>
    %17 = vector.shape_cast %16 : vector<640xf32> to vector<1x640xf32>
    %cst_12 = arith.constant dense<0.000000e+00> : vector<1x31xf32>
    %18 = tpu.matmul %17, %5, %cst_12 {dimension_numbers = #tpu.dot_dimension_numbers<[1], [0], [0], [1], [0, 0, 1, 1], [], []>} : vector<1x640xf32>, vector<640x31xf32>, vector<1x31xf32> -> vector<1x31xf32>
    %19 = arith.mulf %9, %9 : vector<1x31xf32>
    %20 = arith.mulf %19, %6 : vector<1x31xf32>
    %c0_13 = arith.constant 0 : index
    %c0_14 = arith.constant 0 : index
    %21 = vector.load %arg7[%c0_13, %c0_14] : memref<3x31xf32, #tpu.memory_space<vmem>>, vector<3x31xf32>
    %22 = tpu.concatenate %9, %18, %20 in 0 : vector<1x31xf32>, vector<1x31xf32>, vector<1x31xf32> -> vector<3x31xf32>
    %23 = arith.addf %21, %22 : vector<3x31xf32>
    %c0_15 = arith.constant 0 : index
    %c0_16 = arith.constant 0 : index
    %24 = vector.load %arg7[%c0_15, %c0_16] : memref<3x31xf32, #tpu.memory_space<vmem>>, vector<3x31xf32>
    tpu.vector_store %arg7[%c0_15, %c0_16], %23 {strides = array<i32>} : memref<3x31xf32, #tpu.memory_space<vmem>>, vector<3x31xf32>,
    %c1_i32 = arith.constant 1 : i32
    %25 = arith.cmpi eq, %arg1, %c1_i32 : i32
    %26 = arith.extui %25 : i1 to i32
    %c0_i32_17 = arith.constant 0 : i32
    %27 = arith.cmpi ne, %26, %c0_i32_17 : i32
    scf.if %27 {
      %c1 = arith.constant 1 : index
      %c0_18 = arith.constant 0 : index
      %28 = vector.load %arg5[%c1, %c0_18] : memref<2x31xf32, #tpu.memory_space<vmem>>, vector<1x31xf32>
      %c0_19 = arith.constant 0 : index
      %c0_20 = arith.constant 0 : index
      %29 = vector.load %arg7[%c0_19, %c0_20] : memref<3x31xf32, #tpu.memory_space<vmem>>, vector<3x31xf32>
      %30 = vector.extract_strided_slice %29 {offsets = [0, 0], sizes = [1, 31], strides = [1, 1]} : vector<3x31xf32> to vector<1x31xf32>
      %31 = vector.extract_strided_slice %29 {offsets = [1, 0], sizes = [1, 31], strides = [1, 1]} : vector<3x31xf32> to vector<1x31xf32>
      %32 = vector.extract_strided_slice %29 {offsets = [2, 0], sizes = [1, 31], strides = [1, 1]} : vector<3x31xf32> to vector<1x31xf32>
      %33 = arith.mulf %30, %28 : vector<1x31xf32>
      %34 = arith.addf %31, %32 : vector<1x31xf32>
      %35 = arith.mulf %30, %30 : vector<1x31xf32>
      %36 = arith.mulf %35, %28 : vector<1x31xf32>
      %37 = arith.subf %34, %36 : vector<1x31xf32>
      %38 = arith.mulf %37, %28 : vector<1x31xf32>
      %cst_21 = arith.constant 0.000000e+00 : f32
      %39 = vector.broadcast %cst_21 : f32 to vector<1x31xf32>
      %40 = arith.maximumf %38, %39 : vector<1x31xf32>
      %cst_22 = arith.constant 9.99999974E-6 : f32
      %41 = vector.broadcast %cst_22 : f32 to vector<1x31xf32>
      %42 = arith.addf %40, %41 : vector<1x31xf32>
      %43 = math.rsqrt %42 : vector<1x31xf32>
      %44 = tpu.concatenate %33, %43 in 0 : vector<1x31xf32>, vector<1x31xf32> -> vector<2x31xf32>
      %c0_23 = arith.constant 0 : index
      %c0_24 = arith.constant 0 : index
      %c0_25 = arith.constant 0 : index
      %45 = vector.load %arg6[%c0_23, %c0_24, %c0_25] : memref<1x2x31xf32, #tpu.memory_space<vmem>>, vector<1x2x31xf32>
      %46 = vector.shape_cast %45 : vector<1x2x31xf32> to vector<2x31xf32>
      %47 = vector.shape_cast %44 : vector<2x31xf32> to vector<1x2x31xf32>
      tpu.vector_store %arg6[%c0_23, %c0_24, %c0_25], %47 {strides = array<i32>} : memref<1x2x31xf32, #tpu.memory_space<vmem>>, vector<1x2x31xf32>,
    } else {
    }
    return
  }
  func.func @transform_0(%arg0: i32, %arg1: i32) -> (i32, i32, i32) {
    %c0_i32 = arith.constant 0 : i32
    %c0_i32_0 = arith.constant 0 : i32
    return %arg0, %arg1, %c0_i32 : i32, i32, i32
  }
  func.func @transform_1(%arg0: i32, %arg1: i32) -> (i32, i32) {
    %c0_i32 = arith.constant 0 : i32
    %c0_i32_0 = arith.constant 0 : i32
    %c0_i32_1 = arith.constant 0 : i32
    return %c0_i32, %c0_i32_0 : i32, i32
  }
  func.func @transform_2(%arg0: i32, %arg1: i32) -> (i32, i32) {
    %c0_i32 = arith.constant 0 : i32
    %c0_i32_0 = arith.constant 0 : i32
    %c0_i32_1 = arith.constant 0 : i32
    return %c0_i32, %c0_i32_0 : i32, i32
  }
  func.func @transform_3(%arg0: i32, %arg1: i32) -> (i32, i32) {
    %c0_i32 = arith.constant 0 : i32
    %c0_i32_0 = arith.constant 0 : i32
    %c0_i32_1 = arith.constant 0 : i32
    return %c0_i32, %c0_i32_0 : i32, i32
  }
  func.func @transform_4(%arg0: i32, %arg1: i32) -> (i32, i32, i32) {
    %c0_i32 = arith.constant 0 : i32
    %c0_i32_0 = arith.constant 0 : i32
    %c0_i32_1 = arith.constant 0 : i32
    return %arg0, %c0_i32, %c0_i32_0 : i32, i32, i32
  }
}

module attributes {stable_mosaic.version = 11 : i64} {
  func.func @_bandsplit_kernel(%arg0: i32, %arg1: i32, %arg2: memref<1x8x640xf32, #tpu.memory_space<vmem>>, %arg3: memref<1x2x640xf32, #tpu.memory_space<vmem>>, %arg4: memref<128x480xf32, #tpu.memory_space<vmem>>, %arg5: memref<128x256xf32, #tpu.memory_space<vmem>>, %arg6: memref<128x128xf32, #tpu.memory_space<vmem>>, %arg7: memref<128x96xf32, #tpu.memory_space<vmem>>, %arg8: memref<128x32xf32, #tpu.memory_space<vmem>>, %arg9: memref<1x992xf32, #tpu.memory_space<vmem>>, %arg10: memref<1x8x992xf32, #tpu.memory_space<vmem>>) attributes {dimension_semantics = [#tpu.dimension_semantics<parallel>, #tpu.dimension_semantics<parallel>], iteration_bounds = array<i64: 2, 2>, scalar_prefetch = 0 : i64, scratch_operands = 0 : i64, tpu.core_type = #tpu.core_type<tc>, window_params = [{transform_indices = @transform_0, window_bounds = array<i64: 1, 8, 640>}, {transform_indices = @transform_1, window_bounds = array<i64: 1, 2, 640>}, {pipeline_mode = #tpu.pipeline_mode<synchronous>, transform_indices = @transform_2, window_bounds = array<i64: 128, 480>}, {pipeline_mode = #tpu.pipeline_mode<synchronous>, transform_indices = @transform_3, window_bounds = array<i64: 128, 256>}, {pipeline_mode = #tpu.pipeline_mode<synchronous>, transform_indices = @transform_4, window_bounds = array<i64: 128, 128>}, {pipeline_mode = #tpu.pipeline_mode<synchronous>, transform_indices = @transform_5, window_bounds = array<i64: 128, 96>}, {pipeline_mode = #tpu.pipeline_mode<synchronous>, transform_indices = @transform_6, window_bounds = array<i64: 128, 32>}, {pipeline_mode = #tpu.pipeline_mode<synchronous>, transform_indices = @transform_7, window_bounds = array<i64: 1, 992>}, {transform_indices = @transform_8, window_bounds = array<i64: 1, 8, 992>}]} {
    %c0 = arith.constant 0 : index
    %c0_0 = arith.constant 0 : index
    %c0_1 = arith.constant 0 : index
    %0 = vector.load %arg3[%c0, %c0_0, %c0_1] : memref<1x2x640xf32, #tpu.memory_space<vmem>>, vector<1x1x640xf32>
    %1 = vector.shape_cast %0 : vector<1x1x640xf32> to vector<1x640xf32>
    %c0_2 = arith.constant 0 : index
    %c1 = arith.constant 1 : index
    %c0_3 = arith.constant 0 : index
    %2 = vector.load %arg3[%c0_2, %c1, %c0_3] : memref<1x2x640xf32, #tpu.memory_space<vmem>>, vector<1x1x640xf32>
    %3 = vector.shape_cast %2 : vector<1x1x640xf32> to vector<1x640xf32>
    %c0_4 = arith.constant 0 : index
    %c0_5 = arith.constant 0 : index
    %c0_6 = arith.constant 0 : index
    %4 = vector.load %arg2[%c0_4, %c0_5, %c0_6] : memref<1x8x640xf32, #tpu.memory_space<vmem>>, vector<1x8x640xf32>
    %5 = vector.shape_cast %4 : vector<1x8x640xf32> to vector<8x640xf32>
    %6 = vector.broadcast %1 : vector<1x640xf32> to vector<8x640xf32>
    %7 = arith.mulf %5, %6 : vector<8x640xf32>
    %8 = vector.broadcast %3 : vector<1x640xf32> to vector<8x640xf32>
    %9 = arith.addf %7, %8 : vector<8x640xf32>
    %10 = vector.extract_strided_slice %9 {offsets = [0, 0], sizes = [8, 128], strides = [1, 1]} : vector<8x640xf32> to vector<8x128xf32>
    %c0_7 = arith.constant 0 : index
    %c0_8 = arith.constant 0 : index
    %11 = vector.load %arg4[%c0_7, %c0_8] : memref<128x480xf32, #tpu.memory_space<vmem>>, vector<128x480xf32>
    %cst = arith.constant dense<0.000000e+00> : vector<8x480xf32>
    %12 = tpu.matmul %10, %11, %cst {dimension_numbers = #tpu.dot_dimension_numbers<[1], [0], [0], [1], [0, 0, 1, 1], [], []>} : vector<8x128xf32>, vector<128x480xf32>, vector<8x480xf32> -> vector<8x480xf32>
    %13 = vector.extract_strided_slice %9 {offsets = [0, 128], sizes = [8, 128], strides = [1, 1]} : vector<8x640xf32> to vector<8x128xf32>
    %c0_9 = arith.constant 0 : index
    %c0_10 = arith.constant 0 : index
    %14 = vector.load %arg5[%c0_9, %c0_10] : memref<128x256xf32, #tpu.memory_space<vmem>>, vector<128x256xf32>
    %cst_11 = arith.constant dense<0.000000e+00> : vector<8x256xf32>
    %15 = tpu.matmul %13, %14, %cst_11 {dimension_numbers = #tpu.dot_dimension_numbers<[1], [0], [0], [1], [0, 0, 1, 1], [], []>} : vector<8x128xf32>, vector<128x256xf32>, vector<8x256xf32> -> vector<8x256xf32>
    %16 = vector.extract_strided_slice %9 {offsets = [0, 256], sizes = [8, 128], strides = [1, 1]} : vector<8x640xf32> to vector<8x128xf32>
    %c0_12 = arith.constant 0 : index
    %c0_13 = arith.constant 0 : index
    %17 = vector.load %arg6[%c0_12, %c0_13] : memref<128x128xf32, #tpu.memory_space<vmem>>, vector<128x128xf32>
    %cst_14 = arith.constant dense<0.000000e+00> : vector<8x128xf32>
    %18 = tpu.matmul %16, %17, %cst_14 {dimension_numbers = #tpu.dot_dimension_numbers<[1], [0], [0], [1], [0, 0, 1, 1], [], []>} : vector<8x128xf32>, vector<128x128xf32>, vector<8x128xf32> -> vector<8x128xf32>
    %19 = vector.extract_strided_slice %9 {offsets = [0, 384], sizes = [8, 128], strides = [1, 1]} : vector<8x640xf32> to vector<8x128xf32>
    %c0_15 = arith.constant 0 : index
    %c0_16 = arith.constant 0 : index
    %20 = vector.load %arg7[%c0_15, %c0_16] : memref<128x96xf32, #tpu.memory_space<vmem>>, vector<128x96xf32>
    %cst_17 = arith.constant dense<0.000000e+00> : vector<8x96xf32>
    %21 = tpu.matmul %19, %20, %cst_17 {dimension_numbers = #tpu.dot_dimension_numbers<[1], [0], [0], [1], [0, 0, 1, 1], [], []>} : vector<8x128xf32>, vector<128x96xf32>, vector<8x96xf32> -> vector<8x96xf32>
    %22 = vector.extract_strided_slice %9 {offsets = [0, 512], sizes = [8, 128], strides = [1, 1]} : vector<8x640xf32> to vector<8x128xf32>
    %c0_18 = arith.constant 0 : index
    %c0_19 = arith.constant 0 : index
    %23 = vector.load %arg8[%c0_18, %c0_19] : memref<128x32xf32, #tpu.memory_space<vmem>>, vector<128x32xf32>
    %cst_20 = arith.constant dense<0.000000e+00> : vector<8x32xf32>
    %24 = tpu.matmul %22, %23, %cst_20 {dimension_numbers = #tpu.dot_dimension_numbers<[1], [0], [0], [1], [0, 0, 1, 1], [], []>} : vector<8x128xf32>, vector<128x32xf32>, vector<8x32xf32> -> vector<8x32xf32>
    %25 = tpu.concatenate %12, %15, %18, %21, %24 in 1 : vector<8x480xf32>, vector<8x256xf32>, vector<8x128xf32>, vector<8x96xf32>, vector<8x32xf32> -> vector<8x992xf32>
    %c0_21 = arith.constant 0 : index
    %c0_22 = arith.constant 0 : index
    %26 = vector.load %arg9[%c0_21, %c0_22] : memref<1x992xf32, #tpu.memory_space<vmem>>, vector<1x992xf32>
    %27 = vector.broadcast %26 : vector<1x992xf32> to vector<8x992xf32>
    %28 = arith.addf %25, %27 : vector<8x992xf32>
    %c0_23 = arith.constant 0 : index
    %c0_24 = arith.constant 0 : index
    %c0_25 = arith.constant 0 : index
    %29 = vector.load %arg10[%c0_23, %c0_24, %c0_25] : memref<1x8x992xf32, #tpu.memory_space<vmem>>, vector<1x8x992xf32>
    %30 = vector.shape_cast %29 : vector<1x8x992xf32> to vector<8x992xf32>
    %31 = vector.shape_cast %28 : vector<8x992xf32> to vector<1x8x992xf32>
    tpu.vector_store %arg10[%c0_23, %c0_24, %c0_25], %31 {strides = array<i32>} : memref<1x8x992xf32, #tpu.memory_space<vmem>>, vector<1x8x992xf32>,
    return
  }
  func.func @transform_0(%arg0: i32, %arg1: i32) -> (i32, i32, i32) {
    %c0_i32 = arith.constant 0 : i32
    %c0_i32_0 = arith.constant 0 : i32
    return %arg0, %arg1, %c0_i32 : i32, i32, i32
  }
  func.func @transform_1(%arg0: i32, %arg1: i32) -> (i32, i32, i32) {
    %c0_i32 = arith.constant 0 : i32
    %c0_i32_0 = arith.constant 0 : i32
    %c0_i32_1 = arith.constant 0 : i32
    return %arg0, %c0_i32, %c0_i32_0 : i32, i32, i32
  }
  func.func @transform_2(%arg0: i32, %arg1: i32) -> (i32, i32) {
    %c0_i32 = arith.constant 0 : i32
    %c0_i32_0 = arith.constant 0 : i32
    %c0_i32_1 = arith.constant 0 : i32
    return %c0_i32, %c0_i32_0 : i32, i32
  }
  func.func @transform_3(%arg0: i32, %arg1: i32) -> (i32, i32) {
    %c0_i32 = arith.constant 0 : i32
    %c0_i32_0 = arith.constant 0 : i32
    %c0_i32_1 = arith.constant 0 : i32
    return %c0_i32, %c0_i32_0 : i32, i32
  }
  func.func @transform_4(%arg0: i32, %arg1: i32) -> (i32, i32) {
    %c0_i32 = arith.constant 0 : i32
    %c0_i32_0 = arith.constant 0 : i32
    %c0_i32_1 = arith.constant 0 : i32
    return %c0_i32, %c0_i32_0 : i32, i32
  }
  func.func @transform_5(%arg0: i32, %arg1: i32) -> (i32, i32) {
    %c0_i32 = arith.constant 0 : i32
    %c0_i32_0 = arith.constant 0 : i32
    %c0_i32_1 = arith.constant 0 : i32
    return %c0_i32, %c0_i32_0 : i32, i32
  }
  func.func @transform_6(%arg0: i32, %arg1: i32) -> (i32, i32) {
    %c0_i32 = arith.constant 0 : i32
    %c0_i32_0 = arith.constant 0 : i32
    %c0_i32_1 = arith.constant 0 : i32
    return %c0_i32, %c0_i32_0 : i32, i32
  }
  func.func @transform_7(%arg0: i32, %arg1: i32) -> (i32, i32) {
    %c0_i32 = arith.constant 0 : i32
    %c0_i32_0 = arith.constant 0 : i32
    %c0_i32_1 = arith.constant 0 : i32
    return %c0_i32, %c0_i32_0 : i32, i32
  }
  func.func @transform_8(%arg0: i32, %arg1: i32) -> (i32, i32, i32) {
    %c0_i32 = arith.constant 0 : i32
    %c0_i32_0 = arith.constant 0 : i32
    return %arg0, %arg1, %c0_i32 : i32, i32, i32
  }
}

</mosaic_0001>

<llo_original>
// kernel: bandsplit_forward.2
$region0: #{bandsplit_forward.2}
  #allocation0 [shape = 'u32[]', space=smem, size = 0x4, offset = 0x4, fixed_abs, tag = 'smem constant byte address 0x4 - core index']
  #allocation1 [shape = 'u32[144,128]{1,0:T(1,128)}', space=vmem, size = 0x12000, scoped, tag = 'internal scratch']
  #allocation2 [shape = 'f32[3,31]{1,0:T(4,128)}', space=vmem, size = 0x800, scoped, tag = 'scratch operand']
  %s0 = inlined_call_operand.vmem [shape: f32[2,16,640], index: 0, kind: input, shape index: {}]
  %s1 = inlined_call_operand.vmem [shape: f32[640,31], index: 1, kind: input, shape index: {}]
  %s2 = inlined_call_operand.vmem [shape: f32[31,640], index: 2, kind: input, shape index: {}]
  %s3 = inlined_call_operand.vmem [shape: f32[2,31], index: 3, kind: input, shape index: {}]
  %s4 = inlined_call_operand.vmem [shape: f32[2,2,31], index: 4, kind: output, shape index: {}]
  %s5 = sld [smem:[#allocation0]]
  $region57: #{bandsplit_forward.2} parent=0
    _
  %s7 = ssub.s32 1, %s5
  %s8 = scalar_select 0, %s7, %s5
  loop: start=0, step=1, limit=6
  $region2: #{bandsplit_forward.2} parent=0 // loop_pre_header
    _
  $region3: #{bandsplit_forward.2} parent=0 // loop_header
    %s10 = sphi 0, %s14
    %p11 = scmp.ge.s32.totalorder %s10, 6
    %s17 = sphi 0, %s29
    %s18 = sphi 0, %s25
    %s19 = sphi 0, %s17
    %s20 = sphi 0, %s18
    %s21 = sphi 0, %s19
    %s22 = sphi 0, %s20
    %s34 = sphi 0, %s36
    %s37 = sphi 0, %s34
    %s38 = sphi 0, %s37
    %s54 = sphi 0, %s38
    %s58 = sphi 0, %s58
    %s60 = sphi 0, %s58
    %s61 = sphi 0, %s60
    %s75 = sphi 0, %s61
    %s79 = sphi 0, %s79
    %s81 = sphi 0, %s79
    %s82 = sphi 0, %s81
    %s96 = sphi 0, %s82
    %s100 = sphi 0, %s100
    %s102 = sphi 0, %s100
    %s103 = sphi 0, %s102
    %s117 = sphi 0, %s103
    %s123 = sphi 0, %s125
    %s126 = sphi 0, %s123
    %s127 = sphi 0, %s126
    %s143 = sphi 0, %s127
  $region4: #{bandsplit_forward.2} parent=0 // loop_header_branch
    %13 = sbr.rel (%p11) target = $region8
  $region5: #{bandsplit_forward.2} parent=0 // loop_body
    %s15 = ssub.s32 %s10, 1
    %s16 = ssub.s32 %s10, 2
    %s23 = sadd.s32 1, %s18
    %p24 = scmp.ge.s32.totalorder %s23, 2
    %s25 = scalar_select %p24, 0, %s23
    %s26 = sadd.s32 1, %s17
    %s27 = scalar_select %p24, %s26, %s17
    %p28 = scmp.ge.s32.totalorder %s27, 2
    %s29 = scalar_select %p28, 0, %s27
    %s30 = ssub.s32 %s17, %s29
    %s31 = ssub.s32 %s18, %s25
    %s32 = sor.u32 %s30, %s31
    %p33 = scmp.eq.s32.totalorder %s32, 0
    %s35 = sadd.s32 %s34, 1
    %s36 = scalar_select %p33, %s34, %s35
    %p39 = pneg %p33
    %p40 = scmp.eq.s32.totalorder %s10, 3
    %p41 = por %p39, %p40
    %p42 = scmp.ne.s32.totalorder %s34, %s37
    %p43 = scmp.eq.s32.totalorder %s10, 0
    %p44 = por %p42, %p43
    %p45 = scmp.ne.s32.totalorder %s34, %s37
    %p46 = scmp.eq.s32.totalorder %s15, 3
    %p47 = por %p45, %p46
    %p48 = scmp.ne.s32.totalorder %s37, %s38
    %p49 = scmp.eq.s32.totalorder %s15, 0
    %p50 = por %p48, %p49
    %p51 = scmp.ne.s32.totalorder %s37, %s38
    %p52 = scmp.eq.s32.totalorder %s16, 3
    %p53 = por %p51, %p52
    %p55 = scmp.ne.s32.totalorder %s38, %s54
    %p56 = scmp.eq.s32.totalorder %s16, 0
    %p57 = por %p55, %p56
    %s59 = sadd.s32 %s58, 1
    %p62 = scmp.eq.s32.totalorder %s10, 3
    %p63 = scmp.ne.s32.totalorder %s58, %s60
    %p64 = scmp.eq.s32.totalorder %s10, 0
    %p65 = por %p63, %p64
    %p66 = scmp.ne.s32.totalorder %s58, %s60
    %p67 = scmp.eq.s32.totalorder %s15, 3
    %p68 = por %p66, %p67
    %p69 = scmp.ne.s32.totalorder %s60, %s61
    %p70 = scmp.eq.s32.totalorder %s15, 0
    %p71 = por %p69, %p70
    %p72 = scmp.ne.s32.totalorder %s60, %s61
    %p73 = scmp.eq.s32.totalorder %s16, 3
    %p74 = por %p72, %p73
    %p76 = scmp.ne.s32.totalorder %s61, %s75
    %p77 = scmp.eq.s32.totalorder %s16, 0
    %p78 = por %p76, %p77
    %s80 = sadd.s32 %s79, 1
    %p83 = scmp.eq.s32.totalorder %s10, 3
    %p84 = scmp.ne.s32.totalorder %s79, %s81
    %p85 = scmp.eq.s32.totalorder %s10, 0
    %p86 = por %p84, %p85
    %p87 = scmp.ne.s32.totalorder %s79, %s81
    %p88 = scmp.eq.s32.totalorder %s15, 3
    %p89 = por %p87, %p88
    %p90 = scmp.ne.s32.totalorder %s81, %s82
    %p91 = scmp.eq.s32.totalorder %s15, 0
    %p92 = por %p90, %p91
    %p93 = scmp.ne.s32.totalorder %s81, %s82
    %p94 = scmp.eq.s32.totalorder %s16, 3
    %p95 = por %p93, %p94
    %p97 = scmp.ne.s32.totalorder %s82, %s96
    %p98 = scmp.eq.s32.totalorder %s16, 0
    %p99 = por %p97, %p98
    %s101 = sadd.s32 %s100, 1
    %p104 = scmp.eq.s32.totalorder %s10, 3
    %p105 = scmp.ne.s32.totalorder %s100, %s102
    %p106 = scmp.eq.s32.totalorder %s10, 0
    %p107 = por %p105, %p106
    %p108 = scmp.ne.s32.totalorder %s100, %s102
    %p109 = scmp.eq.s32.totalorder %s15, 3
    %p110 = por %p108, %p109
    %p111 = scmp.ne.s32.totalorder %s102, %s103
    %p112 = scmp.eq.s32.totalorder %s15, 0
    %p113 = por %p111, %p112
    %p114 = scmp.ne.s32.totalorder %s102, %s103
    %p115 = scmp.eq.s32.totalorder %s16, 3
    %p116 = por %p114, %p115
    %p118 = scmp.ne.s32.totalorder %s103, %s117
    %p119 = scmp.eq.s32.totalorder %s16, 0
    %p120 = por %p118, %p119
    %s121 = ssub.s32 %s17, %s29
    %p122 = scmp.eq.s32.totalorder %s121, 0
    %s124 = sadd.s32 %s123, 1
    %s125 = scalar_select %p122, %s123, %s124
    %p128 = pneg %p122
    %p129 = scmp.eq.s32.totalorder %s10, 3
    %p130 = por %p128, %p129
    %p131 = scmp.ne.s32.totalorder %s123, %s126
    %p132 = scmp.eq.s32.totalorder %s10, 0
    %p133 = por %p131, %p132
    %p134 = scmp.ne.s32.totalorder %s123, %s126
    %p135 = scmp.eq.s32.totalorder %s15, 3
    %p136 = por %p134, %p135
    %p137 = scmp.ne.s32.totalorder %s126, %s127
    %p138 = scmp.eq.s32.totalorder %s15, 0
    %p139 = por %p137, %p138
    %p140 = scmp.ne.s32.totalorder %s126, %s127
    %p141 = scmp.eq.s32.totalorder %s16, 3
    %p142 = por %p140, %p141
    %p144 = scmp.ne.s32.totalorder %s127, %s143
    %p145 = scmp.eq.s32.totalorder %s16, 0
    %p146 = por %p144, %p145
    %p147 = scmp.le.s32.totalorder 1, %s10
    %p148 = scmp.lt.s32.totalorder %s10, 5
    %p149 = pnand %p147, %p148
    %p150 = pneg %p149
    // Predicated region
    $region9: #{bandsplit_forward.2} parent=5 // pred_check
      _
    $region10: #{bandsplit_forward.2} parent=5 // pred_check_branch
      %152 = sbr.rel (%p149) target = $region12
    $region11: #{bandsplit_forward.2} parent=5 // pred_region
      %s153 = ssub.s32 %s10, 1
      // Predicated region
      $region13: #{bandsplit_forward.2} parent=11 // pred_check
        %p154 = pneg %p71
      $region14: #{bandsplit_forward.2} parent=11 // pred_check_branch
        %156 = sbr.rel (%p154) target = $region16
      $region15: #{bandsplit_forward.2} parent=11 // pred_region
        _
      $region16: #{bandsplit_forward.2} parent=11 // pred_fallthru
        _
      // Predicated region
      $region17: #{bandsplit_forward.2} parent=11 // pred_check
        %p157 = pneg %p92
      $region18: #{bandsplit_forward.2} parent=11 // pred_check_branch
        %159 = sbr.rel (%p157) target = $region20
      $region19: #{bandsplit_forward.2} parent=11 // pred_region
        _
      $region20: #{bandsplit_forward.2} parent=11 // pred_fallthru
        _
      // Predicated region
      $region21: #{bandsplit_forward.2} parent=11 // pred_check
        %p160 = pneg %p113
      $region22: #{bandsplit_forward.2} parent=11 // pred_check_branch
        %162 = sbr.rel (%p160) target = $region24
      $region23: #{bandsplit_forward.2} parent=11 // pred_region
        _
      $region24: #{bandsplit_forward.2} parent=11 // pred_fallthru
        _
    $region12: #{bandsplit_forward.2} parent=5 // pred_fallthru
      _
    %p163 = scmp.lt.s32.totalorder %s10, 4
    // Predicated region
    $region25: #{bandsplit_forward.2} parent=5 // pred_check
      %p164 = pneg %p163
    $region26: #{bandsplit_forward.2} parent=5 // pred_check_branch
      %166 = sbr.rel (%p164) target = $region28
    $region27: #{bandsplit_forward.2} parent=5 // pred_region
      // Predicated region
      $region29: #{bandsplit_forward.2} parent=27 // pred_check
        %p167 = pneg %p44
      $region30: #{bandsplit_forward.2} parent=27 // pred_check_branch
        %169 = sbr.rel (%p167) target = $region32
      $region31: #{bandsplit_forward.2} parent=27 // pred_region
        %p170 = scmp.lt.s32.totalorder %s17, 1
        %s171 = scalar_select %p170, %s17, 1
        %p172 = scmp.lt.s32.totalorder %s18, 1
        %s173 = scalar_select %p172, %s18, 1
        %s174 = smul.addr %s173, 5
        %s175 = smul.addr %s171, 10
        %s176 = sadd.s32 %s174, %s175
        %s177 = smul.addr %s176, 8
        %s178 = scalar_lea.vmem %s0, %s177
      $region32: #{bandsplit_forward.2} parent=27 // pred_fallthru
        _
    $region28: #{bandsplit_forward.2} parent=5 // pred_fallthru
      _
    %p179 = scmp.le.s32.totalorder 1, %s10
    %p180 = scmp.lt.s32.totalorder %s10, 5
    %p181 = pnand %p179, %p180
    %p182 = pneg %p181
    // Predicated region
    $region33: #{bandsplit_forward.2} parent=5 // pred_check
      _
    $region34: #{bandsplit_forward.2} parent=5 // pred_check_branch
      %184 = sbr.rel (%p181) target = $region36
    $region35: #{bandsplit_forward.2} parent=5 // pred_region
      %s185 = ssub.s32 %s10, 1
      %p186 = scmp.lt.s32.totalorder %s19, 1
      %s187 = scalar_select %p186, %s19, 1
      %p188 = scmp.lt.s32.totalorder %s20, 1
      %s189 = scalar_select %p188, %s20, 1
      %s190 = smul.addr %s189, 5
      %s191 = smul.addr %s187, 10
      %s192 = sadd.s32 %s190, %s191
      %s193 = smul.addr %s192, 8
      %s194 = scalar_lea.vmem %s0, %s193
      %p195 = pneg %p50
      %p196 = pneg %p47
      %p197 = pneg %p71
      %p198 = pneg %p68
      %p199 = pneg %p92
      %p200 = pneg %p89
      %p201 = pneg %p113
      %p202 = pneg %p110
      %p203 = pneg %p139
      %p204 = pneg %p136
      %p205 = scmp.lt.s32.totalorder %s19, 1
      %s206 = scalar_select %p205, %s19, 1
      %s207 = smul.addr %s206, 2
      %s208 = scalar_lea.vmem %s4, %s207
      %p209 = scmp.lt.s32.totalorder %s19, 1
      %s210 = scalar_select %p209, %s19, 1
      %p211 = scmp.lt.s32.totalorder %s20, 1
      %s212 = scalar_select %p211, %s20, 1
      %s213 = smul.addr %s212, 5
      %s214 = smul.addr %s210, 10
      %s215 = sadd.s32 %s213, %s214
      %s216 = smul.addr %s215, 8
      %s217 = scalar_lea.vmem %s0, %s216
      %p218 = scmp.lt.s32.totalorder %s19, 1
      %s219 = scalar_select %p218, %s19, 1
      %s220 = smul.addr %s219, 2
      %s221 = scalar_lea.vmem %s4, %s220
      %p222 = scmp.eq.s32.totalorder %s20, 0
      // Predicated region
      $region37: #{bandsplit_forward.2} parent=35 // pred_check
        %p223 = pneg %p222
      $region38: #{bandsplit_forward.2} parent=35 // pred_check_branch
        %225 = sbr.rel (%p223) target = $region40
      $region39: #{bandsplit_forward.2} parent=35 // pred_region
        %vm226 = vcmask 247808
        %227 = vst.msk [vmem:[#allocation2] sm:$0x7] %vm226, 0.0
      $region40: #{bandsplit_forward.2} parent=35 // pred_fallthru
        _
      %v228 = vld [vmem:[%s217] sm:$0xff]
      %v229 = vld [vmem:[%s217 + $0x8] sm:$0xff]
      %v230 = vld [vmem:[%s217 + $0x10] sm:$0xff]
      %v231 = vld [vmem:[%s217 + $0x18] sm:$0xff]
      %v232 = vld [vmem:[%s217 + $0x20] sm:$0xff]
      %v233 = vld [vmem:[%s1] sm:$0xff]
      %v234 = vld [vmem:[%s1 + $0x8] sm:$0xff]
      %v235 = vld [vmem:[%s1 + $0x10] sm:$0xff]
      %v236 = vld [vmem:[%s1 + $0x18] sm:$0xff]
      %v237 = vld [vmem:[%s1 + $0x20] sm:$0xff]
      %v238 = vld [vmem:[%s1 + $0x28] sm:$0xff]
      %v239 = vld [vmem:[%s1 + $0x30] sm:$0xff]
      %v240 = vld [vmem:[%s1 + $0x38] sm:$0xff]
      %v241 = vld [vmem:[%s1 + $0x40] sm:$0xff]
      %v242 = vld [vmem:[%s1 + $0x48] sm:$0xff]
      %v243 = vld [vmem:[%s1 + $0x50] sm:$0xff]
      %v244 = vld [vmem:[%s1 + $0x58] sm:$0xff]
      %v245 = vld [vmem:[%s1 + $0x60] sm:$0xff]
      %v246 = vld [vmem:[%s1 + $0x68] sm:$0xff]
      %v247 = vld [vmem:[%s1 + $0x70] sm:$0xff]
      %v248 = vld [vmem:[%s1 + $0x78] sm:$0xff]
      %v249 = vld [vmem:[%s1 + $0x80] sm:$0xff]
      %v250 = vld [vmem:[%s1 + $0x88] sm:$0xff]
      %v251 = vld [vmem:[%s1 + $0x90] sm:$0xff]
      %v252 = vld [vmem:[%s1 + $0x98] sm:$0xff]
      %v253 = vld [vmem:[%s1 + $0xa0] sm:$0xff]
      %v254 = vld [vmem:[%s1 + $0xa8] sm:$0xff]
      %v255 = vld [vmem:[%s1 + $0xb0] sm:$0xff]
      %v256 = vld [vmem:[%s1 + $0xb8] sm:$0xff]
      %v257 = vld [vmem:[%s1 + $0xc0] sm:$0xff]
      %v258 = vld [vmem:[%s1 + $0xc8] sm:$0xff]
      %v259 = vld [vmem:[%s1 + $0xd0] sm:$0xff]
      %v260 = vld [vmem:[%s1 + $0xd8] sm:$0xff]
      %v261 = vld [vmem:[%s1 + $0xe0] sm:$0xff]
      %v262 = vld [vmem:[%s1 + $0xe8] sm:$0xff]
      %v263 = vld [vmem:[%s1 + $0xf0] sm:$0xff]
      %v264 = vld [vmem:[%s1 + $0xf8] sm:$0xff]
      %v265 = vld [vmem:[%s1 + $0x100] sm:$0xff]
      %v266 = vld [vmem:[%s1 + $0x108] sm:$0xff]
      %v267 = vld [vmem:[%s1 + $0x110] sm:$0xff]
      %v268 = vld [vmem:[%s1 + $0x118] sm:$0xff]
      %v269 = vld [vmem:[%s1 + $0x120] sm:$0xff]
      %v270 = vld [vmem:[%s1 + $0x128] sm:$0xff]
      %v271 = vld [vmem:[%s1 + $0x130] sm:$0xff]
      %v272 = vld [vmem:[%s1 + $0x138] sm:$0xff]
      %v273 = vld [vmem:[%s1 + $0x140] sm:$0xff]
      %v274 = vld [vmem:[%s1 + $0x148] sm:$0xff]
      %v275 = vld [vmem:[%s1 + $0x150] sm:$0xff]
      %v276 = vld [vmem:[%s1 + $0x158] sm:$0xff]
      %v277 = vld [vmem:[%s1 + $0x160] sm:$0xff]
      %v278 = vld [vmem:[%s1 + $0x168] sm:$0xff]
      %v279 = vld [vmem:[%s1 + $0x170] sm:$0xff]
      %v280 = vld [vmem:[%s1 + $0x178] sm:$0xff]
      %v281 = vld [vmem:[%s1 + $0x180] sm:$0xff]
      %v282 = vld [vmem:[%s1 + $0x188] sm:$0xff]
      %v283 = vld [vmem:[%s1 + $0x190] sm:$0xff]
      %v284 = vld [vmem:[%s1 + $0x198] sm:$0xff]
      %v285 = vld [vmem:[%s1 + $0x1a0] sm:$0xff]
      %v286 = vld [vmem:[%s1 + $0x1a8] sm:$0xff]
      %v287 = vld [vmem:[%s1 + $0x1b0] sm:$0xff]
      %v288 = vld [vmem:[%s1 + $0x1b8] sm:$0xff]
      %v289 = vld [vmem:[%s1 + $0x1c0] sm:$0xff]
      %v290 = vld [vmem:[%s1 + $0x1c8] sm:$0xff]
      %v291 = vld [vmem:[%s1 + $0x1d0] sm:$0xff]
      %v292 = vld [vmem:[%s1 + $0x1d8] sm:$0xff]
      %v293 = vld [vmem:[%s1 + $0x1e0] sm:$0xff]
      %v294 = vld [vmem:[%s1 + $0x1e8] sm:$0xff]
      %v295 = vld [vmem:[%s1 + $0x1f0] sm:$0xff]
      %v296 = vld [vmem:[%s1 + $0x1f8] sm:$0xff]
      %v297 = vld [vmem:[%s1 + $0x200] sm:$0xff]
      %v298 = vld [vmem:[%s1 + $0x208] sm:$0xff]
      %v299 = vld [vmem:[%s1 + $0x210] sm:$0xff]
      %v300 = vld [vmem:[%s1 + $0x218] sm:$0xff]
      %v301 = vld [vmem:[%s1 + $0x220] sm:$0xff]
      %v302 = vld [vmem:[%s1 + $0x228] sm:$0xff]
      %v303 = vld [vmem:[%s1 + $0x230] sm:$0xff]
      %v304 = vld [vmem:[%s1 + $0x238] sm:$0xff]
      %v305 = vld [vmem:[%s1 + $0x240] sm:$0xff]
      %v306 = vld [vmem:[%s1 + $0x248] sm:$0xff]
      %v307 = vld [vmem:[%s1 + $0x250] sm:$0xff]
      %v308 = vld [vmem:[%s1 + $0x258] sm:$0xff]
      %v309 = vld [vmem:[%s1 + $0x260] sm:$0xff]
      %v310 = vld [vmem:[%s1 + $0x268] sm:$0xff]
      %v311 = vld [vmem:[%s1 + $0x270] sm:$0xff]
      %v312 = vld [vmem:[%s1 + $0x278] sm:$0xff]
      %v313 = vld [vmem:[%s3] sm:$0x1]
      %v314 = vrot.slane %v228, 4
      %v315 = vadd.f32 %v228, %v314
      %v316 = vrot.slane %v315, 2
      %v317 = vadd.f32 %v315, %v316
      %v318 = vrot.slane %v317, 1
      %v319 = vadd.f32 %v317, %v318
      %v320 = vrot.slane %v229, 4
      %v321 = vadd.f32 %v229, %v320
      %v322 = vrot.slane %v321, 2
      %v323 = vadd.f32 %v321, %v322
      %v324 = vrot.slane %v323, 1
      %v325 = vadd.f32 %v323, %v324
      %v326 = vrot.slane %v230, 4
      %v327 = vadd.f32 %v230, %v326
      %v328 = vrot.slane %v327, 2
      %v329 = vadd.f32 %v327, %v328
      %v330 = vrot.slane %v329, 1
      %v331 = vadd.f32 %v329, %v330
      %v332 = vrot.slane %v231, 4
      %v333 = vadd.f32 %v231, %v332
      %v334 = vrot.slane %v333, 2
      %v335 = vadd.f32 %v333, %v334
      %v336 = vrot.slane %v335, 1
      %v337 = vadd.f32 %v335, %v336
      %v338 = vrot.slane %v232, 4
      %v339 = vadd.f32 %v232, %v338
      %v340 = vrot.slane %v339, 2
      %v341 = vadd.f32 %v339, %v340
      %v342 = vrot.slane %v341, 1
      %v343 = vadd.f32 %v341, %v342
      %344 = vmatprep.subr.mxu0 0.0
      %345 = vmatpush1.msra.mxu0 %v233
      %346 = vmatprep.subr.mxu0 0.0
      %347 = vmatpush1.msra.mxu0 %v234
      %348 = vmatprep.subr.mxu0 0.0
      %349 = vmatpush1.msra.mxu0 %v235
      %350 = vmatprep.subr.mxu0 0.0
      %351 = vmatpush1.msra.mxu0 %v236
      %352 = vmatprep.subr.mxu0 0.0
      %353 = vmatpush1.msra.mxu0 %v237
      %354 = vmatprep.subr.mxu0 0.0
      %355 = vmatpush1.msra.mxu0 %v238
      %356 = vmatprep.subr.mxu0 0.0
      %357 = vmatpush1.msra.mxu0 %v239
      %358 = vmatprep.subr.mxu0 0.0
      %359 = vmatpush1.msra.mxu0 %v240
      %360 = vmatprep.subr.mxu0 0.0
      %361 = vmatpush1.msra.mxu0 %v241
      %362 = vmatprep.subr.mxu0 0.0
      %363 = vmatpush1.msra.mxu0 %v242
      %364 = vmatprep.subr.mxu0 0.0
      %365 = vmatpush1.msra.mxu0 %v243
      %366 = vmatprep.subr.mxu0 0.0
      %367 = vmatpush1.msra.mxu0 %v244
      %368 = vmatprep.subr.mxu0 0.0
      %369 = vmatpush1.msra.mxu0 %v245
      %370 = vmatprep.subr.mxu0 0.0
      %371 = vmatpush1.msra.mxu0 %v246
      %372 = vmatprep.subr.mxu0 0.0
      %373 = vmatpush1.msra.mxu0 %v247
      %374 = vmatprep.subr.mxu0 0.0
      %375 = vmatpush1.msra.mxu0 %v248
      %376 = vmatprep.subr.mxu0 0.0
      %377 = vmatpush1.msra.mxu0 %v249
      %378 = vmatprep.subr.mxu0 0.0
      %379 = vmatpush1.msra.mxu0 %v250
      %380 = vmatprep.subr.mxu0 0.0
      %381 = vmatpush1.msra.mxu0 %v251
      %382 = vmatprep.subr.mxu0 0.0
      %383 = vmatpush1.msra.mxu0 %v252
      %384 = vmatprep.subr.mxu0 0.0
      %385 = vmatpush1.msra.mxu0 %v253
      %386 = vmatprep.subr.mxu0 0.0
      %387 = vmatpush1.msra.mxu0 %v254
      %388 = vmatprep.subr.mxu0 0.0
      %389 = vmatpush1.msra.mxu0 %v255
      %390 = vmatprep.subr.mxu0 0.0
      %391 = vmatpush1.msra.mxu0 %v256
      %392 = vmatprep.subr.mxu0 0.0
      %393 = vmatpush1.msra.mxu0 %v257
      %394 = vmatprep.subr.mxu0 0.0
      %395 = vmatpush1.msra.mxu0 %v258
      %396 = vmatprep.subr.mxu0 0.0
      %397 = vmatpush1.msra.mxu0 %v259
      %398 = vmatprep.subr.mxu0 0.0
      %399 = vmatpush1.msra.mxu0 %v260
      %400 = vmatprep.subr.mxu0 0.0
      %401 = vmatpush1.msra.mxu0 %v261
      %402 = vmatprep.subr.mxu0 0.0
      %403 = vmatpush1.msra.mxu0 %v262
      %404 = vmatprep.subr.mxu0 0.0
      %405 = vmatpush1.msra.mxu0 %v263
      %406 = vmatprep.subr.mxu0 0.0
      %407 = vmatpush1.msra.mxu0 %v264
      %408 = vmatprep.mubr.f32.mxu0 %v325
      %409 = vmatmul.mubr.f32.gmra.mrb[0].mxu0 %v319
      %v410 = vpop.f32.mrb[0].mxu0
      %v411 = vadd.f32 0.0, %v410
      %v412 = vpop.f32.mrb[0].mxu0
      %413 = vdwg.mxu0
      %414 = vmatprep.subr.mxu0 0.0
      %415 = vmatpush1.msra.mxu0 %v265
      %416 = vmatprep.subr.mxu0 0.0
      %417 = vmatpush1.msra.mxu0 %v266
      %418 = vmatprep.subr.mxu0 0.0
      %419 = vmatpush1.msra.mxu0 %v267
      %420 = vmatprep.subr.mxu0 0.0
      %421 = vmatpush1.msra.mxu0 %v268
      %422 = vmatprep.subr.mxu0 0.0
      %423 = vmatpush1.msra.mxu0 %v269
      %424 = vmatprep.subr.mxu0 0.0
      %425 = vmatpush1.msra.mxu0 %v270
      %426 = vmatprep.subr.mxu0 0.0
      %427 = vmatpush1.msra.mxu0 %v271
      %428 = vmatprep.subr.mxu0 0.0
      %429 = vmatpush1.msra.mxu0 %v272
      %430 = vmatprep.subr.mxu0 0.0
      %431 = vmatpush1.msra.mxu0 %v273
      %432 = vmatprep.subr.mxu0 0.0
      %433 = vmatpush1.msra.mxu0 %v274
      %434 = vmatprep.subr.mxu0 0.0
      %435 = vmatpush1.msra.mxu0 %v275
      %436 = vmatprep.subr.mxu0 0.0
      %437 = vmatpush1.msra.mxu0 %v276
      %438 = vmatprep.subr.mxu0 0.0
      %439 = vmatpush1.msra.mxu0 %v277
      %440 = vmatprep.subr.mxu0 0.0
      %441 = vmatpush1.msra.mxu0 %v278
      %442 = vmatprep.subr.mxu0 0.0
      %443 = vmatpush1.msra.mxu0 %v279
      %444 = vmatprep.subr.mxu0 0.0
      %445 = vmatpush1.msra.mxu0 %v280
      %446 = vmatprep.subr.mxu0 0.0
      %447 = vmatpush1.msra.mxu0 %v281
      %448 = vmatprep.subr.mxu0 0.0
      %449 = vmatpush1.msra.mxu0 %v282
      %450 = vmatprep.subr.mxu0 0.0
      %451 = vmatpush1.msra.mxu0 %v283
      %452 = vmatprep.subr.mxu0 0.0
      %453 = vmatpush1.msra.mxu0 %v284
      %454 = vmatprep.subr.mxu0 0.0
      %455 = vmatpush1.msra.mxu0 %v285
      %456 = vmatprep.subr.mxu0 0.0
      %457 = vmatpush1.msra.mxu0 %v286
      %458 = vmatprep.subr.mxu0 0.0
      %459 = vmatpush1.msra.mxu0 %v287
      %460 = vmatprep.subr.mxu0 0.0
      %461 = vmatpush1.msra.mxu0 %v288
      %462 = vmatprep.subr.mxu0 0.0
      %463 = vmatpush1.msra.mxu0 %v289
      %464 = vmatprep.subr.mxu0 0.0
      %465 = vmatpush1.msra.mxu0 %v290
      %466 = vmatprep.subr.mxu0 0.0
      %467 = vmatpush1.msra.mxu0 %v291
      %468 = vmatprep.subr.mxu0 0.0
      %469 = vmatpush1.msra.mxu0 %v292
      %470 = vmatprep.subr.mxu0 0.0
      %471 = vmatpush1.msra.mxu0 %v293
      %472 = vmatprep.subr.mxu0 0.0
      %473 = vmatpush1.msra.mxu0 %v294
      %474 = vmatprep.subr.mxu0 0.0
      %475 = vmatpush1.msra.mxu0 %v295
      %476 = vmatprep.subr.mxu0 0.0
      %477 = vmatpush1.msra.mxu0 %v296
      %478 = vmatprep.mubr.f32.mxu0 %v337
      %479 = vmatmul.mubr.f32.gmra.mrb[0].mxu0 %v331
      %v480 = vpop.f32.mrb[0].mxu0
      %v481 = vadd.f32 %v411, %v480
      %v482 = vpop.f32.mrb[0].mxu0
      %483 = vdwg.mxu0
      %484 = vmatprep.subr.mxu0 0.0
      %485 = vmatpush1.msra.mxu0 %v297
      %486 = vmatprep.subr.mxu0 0.0
      %487 = vmatpush1.msra.mxu0 %v298
      %488 = vmatprep.subr.mxu0 0.0
      %489 = vmatpush1.msra.mxu0 %v299
      %490 = vmatprep.subr.mxu0 0.0
      %491 = vmatpush1.msra.mxu0 %v300
      %492 = vmatprep.subr.mxu0 0.0
      %493 = vmatpush1.msra.mxu0 %v301
      %494 = vmatprep.subr.mxu0 0.0
      %495 = vmatpush1.msra.mxu0 %v302
      %496 = vmatprep.subr.mxu0 0.0
      %497 = vmatpush1.msra.mxu0 %v303
      %498 = vmatprep.subr.mxu0 0.0
      %499 = vmatpush1.msra.mxu0 %v304
      %500 = vmatprep.subr.mxu0 0.0
      %501 = vmatpush1.msra.mxu0 %v305
      %502 = vmatprep.subr.mxu0 0.0
      %503 = vmatpush1.msra.mxu0 %v306
      %504 = vmatprep.subr.mxu0 0.0
      %505 = vmatpush1.msra.mxu0 %v307
      %506 = vmatprep.subr.mxu0 0.0
      %507 = vmatpush1.msra.mxu0 %v308
      %508 = vmatprep.subr.mxu0 0.0
      %509 = vmatpush1.msra.mxu0 %v309
      %510 = vmatprep.subr.mxu0 0.0
      %511 = vmatpush1.msra.mxu0 %v310
      %512 = vmatprep.subr.mxu0 0.0
      %513 = vmatpush1.msra.mxu0 %v311
      %514 = vmatprep.subr.mxu0 0.0
      %515 = vmatpush1.msra.mxu0 %v312
      %516 = vmatprep.subr.mxu0 0.0
      %517 = vmatpush1.msra.mxu0 0.0
      %518 = vmatprep.subr.mxu0 0.0
      %519 = vmatpush1.msra.mxu0 0.0
      %520 = vmatprep.subr.mxu0 0.0
      %521 = vmatpush1.msra.mxu0 0.0
      %522 = vmatprep.subr.mxu0 0.0
      %523 = vmatpush1.msra.mxu0 0.0
      %524 = vmatprep.subr.mxu0 0.0
      %525 = vmatpush1.msra.mxu0 0.0
      %526 = vmatprep.subr.mxu0 0.0
      %527 = vmatpush1.msra.mxu0 0.0
      %528 = vmatprep.subr.mxu0 0.0
      %529 = vmatpush1.msra.mxu0 0.0
      %530 = vmatprep.subr.mxu0 0.0
      %531 = vmatpush1.msra.mxu0 0.0
      %532 = vmatprep.subr.mxu0 0.0
      %533 = vmatpush1.msra.mxu0 0.0
      %534 = vmatprep.subr.mxu0 0.0
      %535 = vmatpush1.msra.mxu0 0.0
      %536 = vmatprep.subr.mxu0 0.0
      %537 = vmatpush1.msra.mxu0 0.0
      %538 = vmatprep.subr.mxu0 0.0
      %539 = vmatpush1.msra.mxu0 0.0
      %540 = vmatprep.subr.mxu0 0.0
      %541 = vmatpush1.msra.mxu0 0.0
      %542 = vmatprep.subr.mxu0 0.0
      %543 = vmatpush1.msra.mxu0 0.0
      %544 = vmatprep.subr.mxu0 0.0
      %545 = vmatpush1.msra.mxu0 0.0
      %546 = vmatprep.subr.mxu0 0.0
      %547 = vmatpush1.msra.mxu0 0.0
      %548 = vmatprep.mubr.f32.mxu0 0.0
      %549 = vmatmul.mubr.f32.gmra.mrb[0].mxu0 %v343
      %v550 = vpop.f32.mrb[0].mxu0
      %v551 = vadd.f32 %v481, %v550
      %v552 = vpop.f32.mrb[0].mxu0
      %553 = vdwg.mxu0
      %v554 = vmul.f32 %v551, %v313
      %v555 = vld [vmem:[%s2] sm:$0xff]
      %v556 = vld [vmem:[%s2 + $0x8] sm:$0xff]
      %v557 = vld [vmem:[%s2 + $0x10] sm:$0xff]
      %v558 = vld [vmem:[%s2 + $0x18] sm:$0xff]
      %v559 = vld [vmem:[%s2 + $0x20] sm:$0xff]
      %v560 = vld [vmem:[%s2 + $0x28] sm:$0xff]
      %v561 = vld [vmem:[%s2 + $0x30] sm:$0xff]
      %v562 = vld [vmem:[%s2 + $0x38] sm:$0xff]
      %v563 = vld [vmem:[%s2 + $0x40] sm:$0xff]
      %v564 = vld [vmem:[%s2 + $0x48] sm:$0xff]
      %v565 = vld [vmem:[%s2 + $0x50] sm:$0xff]
      %v566 = vld [vmem:[%s2 + $0x58] sm:$0xff]
      %v567 = vld [vmem:[%s2 + $0x60] sm:$0xff]
      %v568 = vld [vmem:[%s2 + $0x68] sm:$0xff]
      %v569 = vld [vmem:[%s2 + $0x70] sm:$0xff]
      %v570 = vld [vmem:[%s2 + $0x78] sm:$0x7f]
      %v571 = vld [vmem:[%s2 + $0x80] sm:$0x7f]
      %v572 = vld [vmem:[%s2 + $0x88] sm:$0x7f]
      %v573 = vld [vmem:[%s2 + $0x90] sm:$0x7f]
      %v574 = vld [vmem:[%s2 + $0x98] sm:$0x7f]
      %vm575 = vcmask 252928
      %v577 = vsel %vm575, %v554, 0
      %vm579 = vcmask 1046528
      %v581 = vsel %vm579, %v570, 0
      %v584 = vsel %vm579, %v571, 0
      %v587 = vsel %vm579, %v572, 0
      %v590 = vsel %vm579, %v573, 0
      %v593 = vsel %vm579, %v574, 0
      %595 = vmatprep.subr.mxu0 %v556
      %596 = vmatpush1.msra.mxu0 %v555
      %597 = vmatprep.subr.mxu0 %v561
      %598 = vmatpush1.msra.mxu0 %v560
      %599 = vmatprep.subr.mxu0 %v566
      %600 = vmatpush1.msra.mxu0 %v565
      %601 = vmatprep.subr.mxu0 %v584
      %602 = vmatpush1.msra.mxu0 %v581
      %603 = vmatprep.subr.mxu0 0.0
      %604 = vmatpush1.msra.mxu0 0.0
      %605 = vmatprep.subr.mxu0 0.0
      %606 = vmatpush1.msra.mxu0 0.0
      %607 = vmatprep.subr.mxu0 0.0
      %608 = vmatpush1.msra.mxu0 0.0
      %609 = vmatprep.subr.mxu0 0.0
      %610 = vmatpush1.msra.mxu0 0.0
      %611 = vmatprep.subr.mxu0 0.0
      %612 = vmatpush1.msra.mxu0 0.0
      %613 = vmatprep.subr.mxu0 0.0
      %614 = vmatpush1.msra.mxu0 0.0
      %615 = vmatprep.subr.mxu0 0.0
      %616 = vmatpush1.msra.mxu0 0.0
      %617 = vmatprep.subr.mxu0 0.0
      %618 = vmatpush1.msra.mxu0 0.0
      %619 = vmatprep.subr.mxu0 0.0
      %620 = vmatpush1.msra.mxu0 0.0
      %621 = vmatprep.subr.mxu0 0.0
      %622 = vmatpush1.msra.mxu0 0.0
      %623 = vmatprep.subr.mxu0 0.0
      %624 = vmatpush1.msra.mxu0 0.0
      %625 = vmatprep.subr.mxu0 0.0
      %626 = vmatpush1.msra.mxu0 0.0
      %627 = vmatprep.subr.mxu0 0.0
      %628 = vmatpush1.msra.mxu0 0.0
      %629 = vmatprep.subr.mxu0 0.0
      %630 = vmatpush1.msra.mxu0 0.0
      %631 = vmatprep.subr.mxu0 0.0
      %632 = vmatpush1.msra.mxu0 0.0
      %633 = vmatprep.subr.mxu0 0.0
      %634 = vmatpush1.msra.mxu0 0.0
      %635 = vmatprep.subr.mxu0 0.0
      %636 = vmatpush1.msra.mxu0 0.0
      %637 = vmatprep.subr.mxu0 0.0
      %638 = vmatpush1.msra.mxu0 0.0
      %639 = vmatprep.subr.mxu0 0.0
      %640 = vmatpush1.msra.mxu0 0.0
      %641 = vmatprep.subr.mxu0 0.0
      %642 = vmatpush1.msra.mxu0 0.0
      %643 = vmatprep.subr.mxu0 0.0
      %644 = vmatpush1.msra.mxu0 0.0
      %645 = vmatprep.subr.mxu0 0.0
      %646 = vmatpush1.msra.mxu0 0.0
      %647 = vmatprep.subr.mxu0 0.0
      %648 = vmatpush1.msra.mxu0 0.0
      %649 = vmatprep.subr.mxu0 0.0
      %650 = vmatpush1.msra.mxu0 0.0
      %651 = vmatprep.subr.mxu0 0.0
      %652 = vmatpush1.msra.mxu0 0.0
      %653 = vmatprep.subr.mxu0 0.0
      %654 = vmatpush1.msra.mxu0 0.0
      %655 = vmatprep.subr.mxu0 0.0
      %656 = vmatpush1.msra.mxu0 0.0
      %657 = vmatprep.subr.mxu0 0.0
      %658 = vmatpush1.msra.mxu0 0.0
      %659 = vmatprep.mubr.f32.mxu0 0.0
      %660 = vmatmul.mubr.f32.gmra.mrb[0].mxu0 %v577
      %v661 = vpop.f32.mrb[0].mxu0
      %v662 = vadd.f32 0.0, %v661
      %v663 = vpop.f32.mrb[0].mxu0
      %v664 = vadd.f32 0.0, %v663
      %665 = vdwg.mxu0
      %666 = vmatprep.subr.mxu0 %v558
      %667 = vmatpush1.msra.mxu0 %v557
      %668 = vmatprep.subr.mxu0 %v563
      %669 = vmatpush1.msra.mxu0 %v562
      %670 = vmatprep.subr.mxu0 %v568
      %671 = vmatpush1.msra.mxu0 %v567
      %672 = vmatprep.subr.mxu0 %v590
      %673 = vmatpush1.msra.mxu0 %v587
      %674 = vmatprep.subr.mxu0 0.0
      %675 = vmatpush1.msra.mxu0 0.0
      %676 = vmatprep.subr.mxu0 0.0
      %677 = vmatpush1.msra.mxu0 0.0
      %678 = vmatprep.subr.mxu0 0.0
      %679 = vmatpush1.msra.mxu0 0.0
      %680 = vmatprep.subr.mxu0 0.0
      %681 = vmatpush1.msra.mxu0 0.0
      %682 = vmatprep.subr.mxu0 0.0
      %683 = vmatpush1.msra.mxu0 0.0
      %684 = vmatprep.subr.mxu0 0.0
      %685 = vmatpush1.msra.mxu0 0.0
      %686 = vmatprep.subr.mxu0 0.0
      %687 = vmatpush1.msra.mxu0 0.0
      %688 = vmatprep.subr.mxu0 0.0
      %689 = vmatpush1.msra.mxu0 0.0
      %690 = vmatprep.subr.mxu0 0.0
      %691 = vmatpush1.msra.mxu0 0.0
      %692 = vmatprep.subr.mxu0 0.0
      %693 = vmatpush1.msra.mxu0 0.0
      %694 = vmatprep.subr.mxu0 0.0
      %695 = vmatpush1.msra.mxu0 0.0
      %696 = vmatprep.subr.mxu0 0.0
      %697 = vmatpush1.msra.mxu0 0.0
      %698 = vmatprep.subr.mxu0 0.0
      %699 = vmatpush1.msra.mxu0 0.0
      %700 = vmatprep.subr.mxu0 0.0
      %701 = vmatpush1.msra.mxu0 0.0
      %702 = vmatprep.subr.mxu0 0.0
      %703 = vmatpush1.msra.mxu0 0.0
      %704 = vmatprep.subr.mxu0 0.0
      %705 = vmatpush1.msra.mxu0 0.0
      %706 = vmatprep.subr.mxu0 0.0
      %707 = vmatpush1.msra.mxu0 0.0
      %708 = vmatprep.subr.mxu0 0.0
      %709 = vmatpush1.msra.mxu0 0.0
      %710 = vmatprep.subr.mxu0 0.0
      %711 = vmatpush1.msra.mxu0 0.0
      %712 = vmatprep.subr.mxu0 0.0
      %713 = vmatpush1.msra.mxu0 0.0
      %714 = vmatprep.subr.mxu0 0.0
      %715 = vmatpush1.msra.mxu0 0.0
      %716 = vmatprep.subr.mxu0 0.0
      %717 = vmatpush1.msra.mxu0 0.0
      %718 = vmatprep.subr.mxu0 0.0
      %719 = vmatpush1.msra.mxu0 0.0
      %720 = vmatprep.subr.mxu0 0.0
      %721 = vmatpush1.msra.mxu0 0.0
      %722 = vmatprep.subr.mxu0 0.0
      %723 = vmatpush1.msra.mxu0 0.0
      %724 = vmatprep.subr.mxu0 0.0
      %725 = vmatpush1.msra.mxu0 0.0
      %726 = vmatprep.subr.mxu0 0.0
      %727 = vmatpush1.msra.mxu0 0.0
      %728 = vmatprep.subr.mxu0 0.0
      %729 = vmatpush1.msra.mxu0 0.0
      %730 = vmatprep.mubr.f32.mxu0 0.0
      %731 = vmatmul.mubr.f32.gmra.mrb[0].mxu0 %v577
      %v732 = vpop.f32.mrb[0].mxu0
      %v733 = vadd.f32 0.0, %v732
      %v734 = vpop.f32.mrb[0].mxu0
      %v735 = vadd.f32 0.0, %v734
      %736 = vdwg.mxu0
      %737 = vmatprep.subr.mxu0 0.0
      %738 = vmatpush1.msra.mxu0 %v559
      %739 = vmatprep.subr.mxu0 0.0
      %740 = vmatpush1.msra.mxu0 %v564
      %741 = vmatprep.subr.mxu0 0.0
      %742 = vmatpush1.msra.mxu0 %v569
      %743 = vmatprep.subr.mxu0 0.0
      %744 = vmatpush1.msra.mxu0 %v593
      %745 = vmatprep.subr.mxu0 0.0
      %746 = vmatpush1.msra.mxu0 0.0
      %747 = vmatprep.subr.mxu0 0.0
      %748 = vmatpush1.msra.mxu0 0.0
      %749 = vmatprep.subr.mxu0 0.0
      %750 = vmatpush1.msra.mxu0 0.0
      %751 = vmatprep.subr.mxu0 0.0
      %752 = vmatpush1.msra.mxu0 0.0
      %753 = vmatprep.subr.mxu0 0.0
      %754 = vmatpush1.msra.mxu0 0.0
      %755 = vmatprep.subr.mxu0 0.0
      %756 = vmatpush1.msra.mxu0 0.0
      %757 = vmatprep.subr.mxu0 0.0
      %758 = vmatpush1.msra.mxu0 0.0
      %759 = vmatprep.subr.mxu0 0.0
      %760 = vmatpush1.msra.mxu0 0.0
      %761 = vmatprep.subr.mxu0 0.0
      %762 = vmatpush1.msra.mxu0 0.0
      %763 = vmatprep.subr.mxu0 0.0
      %764 = vmatpush1.msra.mxu0 0.0
      %765 = vmatprep.subr.mxu0 0.0
      %766 = vmatpush1.msra.mxu0 0.0
      %767 = vmatprep.subr.mxu0 0.0
      %768 = vmatpush1.msra.mxu0 0.0
      %769 = vmatprep.subr.mxu0 0.0
      %770 = vmatpush1.msra.mxu0 0.0
      %771 = vmatprep.subr.mxu0 0.0
      %772 = vmatpush1.msra.mxu0 0.0
      %773 = vmatprep.subr.mxu0 0.0
      %774 = vmatpush1.msra.mxu0 0.0
      %775 = vmatprep.subr.mxu0 0.0
      %776 = vmatpush1.msra.mxu0 0.0
      %777 = vmatprep.subr.mxu0 0.0
      %778 = vmatpush1.msra.mxu0 0.0
      %779 = vmatprep.subr.mxu0 0.0
      %780 = vmatpush1.msra.mxu0 0.0
      %781 = vmatprep.subr.mxu0 0.0
      %782 = vmatpush1.msra.mxu0 0.0
      %783 = vmatprep.subr.mxu0 0.0
      %784 = vmatpush1.msra.mxu0 0.0
      %785 = vmatprep.subr.mxu0 0.0
      %786 = vmatpush1.msra.mxu0 0.0
      %787 = vmatprep.subr.mxu0 0.0
      %788 = vmatpush1.msra.mxu0 0.0
      %789 = vmatprep.subr.mxu0 0.0
      %790 = vmatpush1.msra.mxu0 0.0
      %791 = vmatprep.subr.mxu0 0.0
      %792 = vmatpush1.msra.mxu0 0.0
      %793 = vmatprep.subr.mxu0 0.0
      %794 = vmatpush1.msra.mxu0 0.0
      %795 = vmatprep.subr.mxu0 0.0
      %796 = vmatpush1.msra.mxu0 0.0
      %797 = vmatprep.subr.mxu0 0.0
      %798 = vmatpush1.msra.mxu0 0.0
      %799 = vmatprep.subr.mxu0 0.0
      %800 = vmatpush1.msra.mxu0 0.0
      %801 = vmatprep.mubr.f32.mxu0 0.0
      %802 = vmatmul.mubr.f32.gmra.mrb[0].mxu0 %v577
      %v803 = vpop.f32.mrb[0].mxu0
      %v804 = vadd.f32 0.0, %v803
      %v805 = vpop.f32.mrb[0].mxu0
      %806 = vdwg.mxu0
      %v807 = vlaneseq
      %v808 = vshrl.u32 %v807, 7
      %v809 = vsub.s32 0, %v808
      %v810 = vrot.slane %v662, %v809
      %v811 = vlaneseq
      %v812 = vshrl.u32 %v811, 7
      %v813 = vsub.s32 0, %v812
      %v814 = vrot.slane %v664, %v813
      %v815 = vlaneseq
      %v816 = vshrl.u32 %v815, 7
      %v817 = vsub.s32 0, %v816
      %v818 = vrot.slane %v733, %v817
      %v819 = vlaneseq
      %v820 = vshrl.u32 %v819, 7
      %v821 = vsub.s32 0, %v820
      %v822 = vrot.slane %v735, %v821
      %v823 = vlaneseq
      %v824 = vshrl.u32 %v823, 7
      %v825 = vsub.s32 0, %v824
      %v826 = vrot.slane %v804, %v825
      %v827 = vsub.f32 %v228, %v810
      %v828 = vsub.f32 %v229, %v814
      %v829 = vsub.f32 %v230, %v818
      %v830 = vsub.f32 %v231, %v822
      %v831 = vsub.f32 %v232, %v826
      %v832 = vmul.f32 %v827, %v827
      %v833 = vmul.f32 %v828, %v828
      %v834 = vmul.f32 %v829, %v829
      %v835 = vmul.f32 %v830, %v830
      %v836 = vmul.f32 %v831, %v831
      %v837 = vrot.slane %v832, 4
      %v838 = vadd.f32 %v832, %v837
      %v839 = vrot.slane %v838, 2
      %v840 = vadd.f32 %v838, %v839
      %v841 = vrot.slane %v840, 1
      %v842 = vadd.f32 %v840, %v841
      %v843 = vrot.slane %v833, 4
      %v844 = vadd.f32 %v833, %v843
      %v845 = vrot.slane %v844, 2
      %v846 = vadd.f32 %v844, %v845
      %v847 = vrot.slane %v846, 1
      %v848 = vadd.f32 %v846, %v847
      %v849 = vrot.slane %v834, 4
      %v850 = vadd.f32 %v834, %v849
      %v851 = vrot.slane %v850, 2
      %v852 = vadd.f32 %v850, %v851
      %v853 = vrot.slane %v852, 1
      %v854 = vadd.f32 %v852, %v853
      %v855 = vrot.slane %v835, 4
      %v856 = vadd.f32 %v835, %v855
      %v857 = vrot.slane %v856, 2
      %v858 = vadd.f32 %v856, %v857
      %v859 = vrot.slane %v858, 1
      %v860 = vadd.f32 %v858, %v859
      %v861 = vrot.slane %v836, 4
      %v862 = vadd.f32 %v836, %v861
      %v863 = vrot.slane %v862, 2
      %v864 = vadd.f32 %v862, %v863
      %v865 = vrot.slane %v864, 1
      %v866 = vadd.f32 %v864, %v865
      %867 = vmatprep.subr.mxu0 0.0
      %868 = vmatpush1.msra.mxu0 %v233
      %869 = vmatprep.subr.mxu0 0.0
      %870 = vmatpush1.msra.mxu0 %v234
      %871 = vmatprep.subr.mxu0 0.0
      %872 = vmatpush1.msra.mxu0 %v235
      %873 = vmatprep.subr.mxu0 0.0
      %874 = vmatpush1.msra.mxu0 %v236
      %875 = vmatprep.subr.mxu0 0.0
      %876 = vmatpush1.msra.mxu0 %v237
      %877 = vmatprep.subr.mxu0 0.0
      %878 = vmatpush1.msra.mxu0 %v238
      %879 = vmatprep.subr.mxu0 0.0
      %880 = vmatpush1.msra.mxu0 %v239
      %881 = vmatprep.subr.mxu0 0.0
      %882 = vmatpush1.msra.mxu0 %v240
      %883 = vmatprep.subr.mxu0 0.0
      %884 = vmatpush1.msra.mxu0 %v241
      %885 = vmatprep.subr.mxu0 0.0
      %886 = vmatpush1.msra.mxu0 %v242
      %887 = vmatprep.subr.mxu0 0.0
      %888 = vmatpush1.msra.mxu0 %v243
      %889 = vmatprep.subr.mxu0 0.0
      %890 = vmatpush1.msra.mxu0 %v244
      %891 = vmatprep.subr.mxu0 0.0
      %892 = vmatpush1.msra.mxu0 %v245
      %893 = vmatprep.subr.mxu0 0.0
      %894 = vmatpush1.msra.mxu0 %v246
      %895 = vmatprep.subr.mxu0 0.0
      %896 = vmatpush1.msra.mxu0 %v247
      %897 = vmatprep.subr.mxu0 0.0
      %898 = vmatpush1.msra.mxu0 %v248
      %899 = vmatprep.subr.mxu0 0.0
      %900 = vmatpush1.msra.mxu0 %v249
      %901 = vmatprep.subr.mxu0 0.0
      %902 = vmatpush1.msra.mxu0 %v250
      %903 = vmatprep.subr.mxu0 0.0
      %904 = vmatpush1.msra.mxu0 %v251
      %905 = vmatprep.subr.mxu0 0.0
      %906 = vmatpush1.msra.mxu0 %v252
      %907 = vmatprep.subr.mxu0 0.0
      %908 = vmatpush1.msra.mxu0 %v253
      %909 = vmatprep.subr.mxu0 0.0
      %910 = vmatpush1.msra.mxu0 %v254
      %911 = vmatprep.subr.mxu0 0.0
      %912 = vmatpush1.msra.mxu0 %v255
      %913 = vmatprep.subr.mxu0 0.0
      %914 = vmatpush1.msra.mxu0 %v256
      %915 = vmatprep.subr.mxu0 0.0
      %916 = vmatpush1.msra.mxu0 %v257
      %917 = vmatprep.subr.mxu0 0.0
      %918 = vmatpush1.msra.mxu0 %v258
      %919 = vmatprep.subr.mxu0 0.0
      %920 = vmatpush1.msra.mxu0 %v259
      %921 = vmatprep.subr.mxu0 0.0
      %922 = vmatpush1.msra.mxu0 %v260
      %923 = vmatprep.subr.mxu0 0.0
      %924 = vmatpush1.msra.mxu0 %v261
      %925 = vmatprep.subr.mxu0 0.0
      %926 = vmatpush1.msra.mxu0 %v262
      %927 = vmatprep.subr.mxu0 0.0
      %928 = vmatpush1.msra.mxu0 %v263
      %929 = vmatprep.subr.mxu0 0.0
      %930 = vmatpush1.msra.mxu0 %v264
      %931 = vmatprep.mubr.f32.mxu0 %v848
      %932 = vmatmul.mubr.f32.gmra.mrb[0].mxu0 %v842
      %v933 = vpop.f32.mrb[0].mxu0
      %v934 = vadd.f32 0.0, %v933
      %v935 = vpop.f32.mrb[0].mxu0
      %936 = vdwg.mxu0
      %937 = vmatprep.subr.mxu0 0.0
      %938 = vmatpush1.msra.mxu0 %v265
      %939 = vmatprep.subr.mxu0 0.0
      %940 = vmatpush1.msra.mxu0 %v266
      %941 = vmatprep.subr.mxu0 0.0
      %942 = vmatpush1.msra.mxu0 %v267
      %943 = vmatprep.subr.mxu0 0.0
      %944 = vmatpush1.msra.mxu0 %v268
      %945 = vmatprep.subr.mxu0 0.0
      %946 = vmatpush1.msra.mxu0 %v269
      %947 = vmatprep.subr.mxu0 0.0
      %948 = vmatpush1.msra.mxu0 %v270
      %949 = vmatprep.subr.mxu0 0.0
      %950 = vmatpush1.msra.mxu0 %v271
      %951 = vmatprep.subr.mxu0 0.0
      %952 = vmatpush1.msra.mxu0 %v272
      %953 = vmatprep.subr.mxu0 0.0
      %954 = vmatpush1.msra.mxu0 %v273
      %955 = vmatprep.subr.mxu0 0.0
      %956 = vmatpush1.msra.mxu0 %v274
      %957 = vmatprep.subr.mxu0 0.0
      %958 = vmatpush1.msra.mxu0 %v275
      %959 = vmatprep.subr.mxu0 0.0
      %960 = vmatpush1.msra.mxu0 %v276
      %961 = vmatprep.subr.mxu0 0.0
      %962 = vmatpush1.msra.mxu0 %v277
      %963 = vmatprep.subr.mxu0 0.0
      %964 = vmatpush1.msra.mxu0 %v278
      %965 = vmatprep.subr.mxu0 0.0
      %966 = vmatpush1.msra.mxu0 %v279
      %967 = vmatprep.subr.mxu0 0.0
      %968 = vmatpush1.msra.mxu0 %v280
      %969 = vmatprep.subr.mxu0 0.0
      %970 = vmatpush1.msra.mxu0 %v281
      %971 = vmatprep.subr.mxu0 0.0
      %972 = vmatpush1.msra.mxu0 %v282
      %973 = vmatprep.subr.mxu0 0.0
      %974 = vmatpush1.msra.mxu0 %v283
      %975 = vmatprep.subr.mxu0 0.0
      %976 = vmatpush1.msra.mxu0 %v284
      %977 = vmatprep.subr.mxu0 0.0
      %978 = vmatpush1.msra.mxu0 %v285
      %979 = vmatprep.subr.mxu0 0.0
      %980 = vmatpush1.msra.mxu0 %v286
      %981 = vmatprep.subr.mxu0 0.0
      %982 = vmatpush1.msra.mxu0 %v287
      %983 = vmatprep.subr.mxu0 0.0
      %984 = vmatpush1.msra.mxu0 %v288
      %985 = vmatprep.subr.mxu0 0.0
      %986 = vmatpush1.msra.mxu0 %v289
      %987 = vmatprep.subr.mxu0 0.0
      %988 = vmatpush1.msra.mxu0 %v290
      %989 = vmatprep.subr.mxu0 0.0
      %990 = vmatpush1.msra.mxu0 %v291
      %991 = vmatprep.subr.mxu0 0.0
      %992 = vmatpush1.msra.mxu0 %v292
      %993 = vmatprep.subr.mxu0 0.0
      %994 = vmatpush1.msra.mxu0 %v293
      %995 = vmatprep.subr.mxu0 0.0
      %996 = vmatpush1.msra.mxu0 %v294
      %997 = vmatprep.subr.mxu0 0.0
      %998 = vmatpush1.msra.mxu0 %v295
      %999 = vmatprep.subr.mxu0 0.0
      %1000 = vmatpush1.msra.mxu0 %v296
      %1001 = vmatprep.mubr.f32.mxu0 %v860
      %1002 = vmatmul.mubr.f32.gmra.mrb[0].mxu0 %v854
      %v1003 = vpop.f32.mrb[0].mxu0
      %v1004 = vadd.f32 %v934, %v1003
      %v1005 = vpop.f32.mrb[0].mxu0
      %1006 = vdwg.mxu0
      %1007 = vmatprep.subr.mxu0 0.0
      %1008 = vmatpush1.msra.mxu0 %v297
      %1009 = vmatprep.subr.mxu0 0.0
      %1010 = vmatpush1.msra.mxu0 %v298
      %1011 = vmatprep.subr.mxu0 0.0
      %1012 = vmatpush1.msra.mxu0 %v299
      %1013 = vmatprep.subr.mxu0 0.0
      %1014 = vmatpush1.msra.mxu0 %v300
      %1015 = vmatprep.subr.mxu0 0.0
      %1016 = vmatpush1.msra.mxu0 %v301
      %1017 = vmatprep.subr.mxu0 0.0
      %1018 = vmatpush1.msra.mxu0 %v302
      %1019 = vmatprep.subr.mxu0 0.0
      %1020 = vmatpush1.msra.mxu0 %v303
      %1021 = vmatprep.subr.mxu0 0.0
      %1022 = vmatpush1.msra.mxu0 %v304
      %1023 = vmatprep.subr.mxu0 0.0
      %1024 = vmatpush1.msra.mxu0 %v305
      %1025 = vmatprep.subr.mxu0 0.0
      %1026 = vmatpush1.msra.mxu0 %v306
      %1027 = vmatprep.subr.mxu0 0.0
      %1028 = vmatpush1.msra.mxu0 %v307
      %1029 = vmatprep.subr.mxu0 0.0
      %1030 = vmatpush1.msra.mxu0 %v308
      %1031 = vmatprep.subr.mxu0 0.0
      %1032 = vmatpush1.msra.mxu0 %v309
      %1033 = vmatprep.subr.mxu0 0.0
      %1034 = vmatpush1.msra.mxu0 %v310
      %1035 = vmatprep.subr.mxu0 0.0
      %1036 = vmatpush1.msra.mxu0 %v311
      %1037 = vmatprep.subr.mxu0 0.0
      %1038 = vmatpush1.msra.mxu0 %v312
      %1039 = vmatprep.subr.mxu0 0.0
      %1040 = vmatpush1.msra.mxu0 0.0
      %1041 = vmatprep.subr.mxu0 0.0
      %1042 = vmatpush1.msra.mxu0 0.0
      %1043 = vmatprep.subr.mxu0 0.0
      %1044 = vmatpush1.msra.mxu0 0.0
      %1045 = vmatprep.subr.mxu0 0.0
      %1046 = vmatpush1.msra.mxu0 0.0
      %1047 = vmatprep.subr.mxu0 0.0
      %1048 = vmatpush1.msra.mxu0 0.0
      %1049 = vmatprep.subr.mxu0 0.0
      %1050 = vmatpush1.msra.mxu0 0.0
      %1051 = vmatprep.subr.mxu0 0.0
      %1052 = vmatpush1.msra.mxu0 0.0
      %1053 = vmatprep.subr.mxu0 0.0
      %1054 = vmatpush1.msra.mxu0 0.0
      %1055 = vmatprep.subr.mxu0 0.0
      %1056 = vmatpush1.msra.mxu0 0.0
      %1057 = vmatprep.subr.mxu0 0.0
      %1058 = vmatpush1.msra.mxu0 0.0
      %1059 = vmatprep.subr.mxu0 0.0
      %1060 = vmatpush1.msra.mxu0 0.0
      %1061 = vmatprep.subr.mxu0 0.0
      %1062 = vmatpush1.msra.mxu0 0.0
      %1063 = vmatprep.subr.mxu0 0.0
      %1064 = vmatpush1.msra.mxu0 0.0
      %1065 = vmatprep.subr.mxu0 0.0
      %1066 = vmatpush1.msra.mxu0 0.0
      %1067 = vmatprep.subr.mxu0 0.0
      %1068 = vmatpush1.msra.mxu0 0.0
      %1069 = vmatprep.subr.mxu0 0.0
      %1070 = vmatpush1.msra.mxu0 0.0
      %1071 = vmatprep.mubr.f32.mxu0 0.0
      %1072 = vmatmul.mubr.f32.gmra.mrb[0].mxu0 %v866
      %v1073 = vpop.f32.mrb[0].mxu0
      %v1074 = vadd.f32 %v1004, %v1073
      %v1075 = vpop.f32.mrb[0].mxu0
      %1076 = vdwg.mxu0
      %v1077 = vmul.f32 %v551, %v551
      %v1078 = vmul.f32 %v1077, %v313
      %v1079 = vld [vmem:[#allocation2] sm:$0x7]
      %v1081 = vrot.slane %v1074, 7
      %v1084 = vrot.slane %v1078, 6
      %vm1086 = vcmask 1040384
      %v1087 = vsel %vm1086, %v551, %v1081
      %vm1088 = vcmask 1041408
      %v1089 = vsel %vm1088, %v1087, %v1084
      %v1090 = vadd.f32 %v1079, %v1089
      %vm1091 = vcmask 247808
      %1092 = vst.msk [vmem:[#allocation2] sm:$0x7] %vm1091, %v1090
      %p1093 = scmp.eq.s32.totalorder %s20, 1
      // Predicated region
      $region41: #{bandsplit_forward.2} parent=35 // pred_check
        %p1094 = pneg %p1093
      $region42: #{bandsplit_forward.2} parent=35 // pred_check_branch
        %1096 = sbr.rel (%p1094) target = $region44
      $region43: #{bandsplit_forward.2} parent=35 // pred_region
        %v1097 = vld [vmem:[%s3 + $0x1] sm:$0x1]
        %v1098 = vld [vmem:[#allocation2] sm:$0x7]
        %v1099 = vmul.f32 %v1098, %v1097
        %v1101 = vrot.slane %v1098, 1
        %v1103 = vadd.f32 %v1098, %v1101
        %v1104 = vmul.f32 %v1098, %v1098
        %v1105 = vmul.f32 %v1104, %v1097
        %v1107 = vrot.slane %v1105, 7
        %v1109 = vsub.f32 %v1103, %v1107
        %v1111 = vrot.slane %v1097, 7
        %v1113 = vmul.f32 %v1109, %v1111
        %v1114 = vmax.f32 %v1113, 0.0
        %v1115 = vadd.f32 %v1114, 1e-05
        %v1116 = vrsqrt.pop %v1115
        %v1117 = vsel %vm1086, %v1099, %v1116
        %vm1118 = vcmask 246784
        %1119 = vst.msk [vmem:[%s221] sm:$0x3] %vm1118, %v1117
      $region44: #{bandsplit_forward.2} parent=35 // pred_fallthru
        _
      %p1120 = scmp.lt.s32.totalorder %s19, 1
      %s1121 = scalar_select %p1120, %s19, 1
      %s1122 = smul.addr %s1121, 2
      %s1123 = scalar_lea.vmem %s4, %s1122
      // Predicated region
      $region45: #{bandsplit_forward.2} parent=35 // pred_check
        %p1124 = pneg %p136
      $region46: #{bandsplit_forward.2} parent=35 // pred_check_branch
        %1126 = sbr.rel (%p1124) target = $region48
      $region47: #{bandsplit_forward.2} parent=35 // pred_region
        _
      $region48: #{bandsplit_forward.2} parent=35 // pred_fallthru
        _
    $region36: #{bandsplit_forward.2} parent=5 // pred_fallthru
      _
    %p1127 = scmp.le.s32.totalorder 2, %s10
    // Predicated region
    $region49: #{bandsplit_forward.2} parent=5 // pred_check
      %p1128 = pneg %p1127
    $region50: #{bandsplit_forward.2} parent=5 // pred_check_branch
      %1130 = sbr.rel (%p1128) target = $region52
    $region51: #{bandsplit_forward.2} parent=5 // pred_region
      %s1131 = ssub.s32 %s10, 2
      // Predicated region
      $region53: #{bandsplit_forward.2} parent=51 // pred_check
        %p1132 = pneg %p142
      $region54: #{bandsplit_forward.2} parent=51 // pred_check_branch
        %1134 = sbr.rel (%p1132) target = $region56
      $region55: #{bandsplit_forward.2} parent=51 // pred_region
        %p1135 = scmp.lt.s32.totalorder %s21, 1
        %s1136 = scalar_select %p1135, %s21, 1
        %s1137 = smul.addr %s1136, 2
        %s1138 = scalar_lea.vmem %s4, %s1137
      $region56: #{bandsplit_forward.2} parent=51 // pred_fallthru
        _
    $region52: #{bandsplit_forward.2} parent=5 // pred_fallthru
      _
  $region6: #{bandsplit_forward.2} parent=0 // loop_footer
    %s14 = sadd.s32 1, %s10
  $region7: #{bandsplit_forward.2} parent=0 // loop_footer_branch
    %9 = sbr.rel target = $region3
  $region8: #{bandsplit_forward.2} parent=0 // loop_exit
    _

// kernel: bandsplit_forward.3
$region0: #{bandsplit_forward.3}
  #allocation0 [shape = 'u32[]', space=smem, size = 0x4, offset = 0x4, fixed_abs, tag = 'smem constant byte address 0x4 - core index']
  #allocation1 [shape = 'u32[144,128]{1,0:T(1,128)}', space=vmem, size = 0x12000, scoped, tag = 'internal scratch']
  %s0 = inlined_call_operand.vmem [shape: f32[2,16,640], index: 0, kind: input, shape index: {}]
  %s1 = inlined_call_operand.vmem [shape: f32[2,2,640], index: 1, kind: input, shape index: {}]
  %s2 = inlined_call_operand.vmem [shape: f32[128,480], index: 2, kind: input, shape index: {}]
  %s3 = inlined_call_operand.vmem [shape: f32[128,256], index: 3, kind: input, shape index: {}]
  %s4 = inlined_call_operand.vmem [shape: f32[128,128], index: 4, kind: input, shape index: {}]
  %s5 = inlined_call_operand.vmem [shape: f32[128,96], index: 5, kind: input, shape index: {}]
  %s6 = inlined_call_operand.vmem [shape: f32[128,32], index: 6, kind: input, shape index: {}]
  %s7 = inlined_call_operand.vmem [shape: f32[1,992], index: 7, kind: input, shape index: {}]
  %s8 = inlined_call_operand.vmem [shape: f32[2,16,992], index: 8, kind: output, shape index: {}]
  %s9 = sld [smem:[#allocation0]]
  $region65: #{bandsplit_forward.3} parent=0
    _
  %s11 = ssub.s32 1, %s9
  %s12 = scalar_select 0, %s11, %s9
  loop: start=0, step=1, limit=6
  $region2: #{bandsplit_forward.3} parent=0 // loop_pre_header
    _
  $region3: #{bandsplit_forward.3} parent=0 // loop_header
    %s14 = sphi 0, %s18
    %p15 = scmp.ge.s32.totalorder %s14, 6
    %s21 = sphi 0, %s33
    %s22 = sphi 0, %s29
    %s23 = sphi 0, %s21
    %s24 = sphi 0, %s22
    %s25 = sphi 0, %s23
    %s26 = sphi 0, %s24
    %s38 = sphi 0, %s40
    %s41 = sphi 0, %s38
    %s42 = sphi 0, %s41
    %s58 = sphi 0, %s42
    %s64 = sphi 0, %s66
    %s67 = sphi 0, %s64
    %s68 = sphi 0, %s67
    %s84 = sphi 0, %s68
    %s88 = sphi 0, %s88
    %s90 = sphi 0, %s88
    %s91 = sphi 0, %s90
    %s105 = sphi 0, %s91
    %s109 = sphi 0, %s109
    %s111 = sphi 0, %s109
    %s112 = sphi 0, %s111
    %s126 = sphi 0, %s112
    %s130 = sphi 0, %s130
    %s132 = sphi 0, %s130
    %s133 = sphi 0, %s132
    %s147 = sphi 0, %s133
    %s151 = sphi 0, %s151
    %s153 = sphi 0, %s151
    %s154 = sphi 0, %s153
    %s168 = sphi 0, %s154
    %s172 = sphi 0, %s172
    %s174 = sphi 0, %s172
    %s175 = sphi 0, %s174
    %s189 = sphi 0, %s175
    %s193 = sphi 0, %s193
    %s195 = sphi 0, %s193
    %s196 = sphi 0, %s195
    %s210 = sphi 0, %s196
    %s218 = sphi 0, %s220
    %s221 = sphi 0, %s218
    %s222 = sphi 0, %s221
    %s238 = sphi 0, %s222
  $region4: #{bandsplit_forward.3} parent=0 // loop_header_branch
    %17 = sbr.rel (%p15) target = $region8
  $region5: #{bandsplit_forward.3} parent=0 // loop_body
    %s19 = ssub.s32 %s14, 1
    %s20 = ssub.s32 %s14, 2
    %s27 = sadd.s32 1, %s22
    %p28 = scmp.ge.s32.totalorder %s27, 2
    %s29 = scalar_select %p28, 0, %s27
    %s30 = sadd.s32 1, %s21
    %s31 = scalar_select %p28, %s30, %s21
    %p32 = scmp.ge.s32.totalorder %s31, 2
    %s33 = scalar_select %p32, 0, %s31
    %s34 = ssub.s32 %s21, %s33
    %s35 = ssub.s32 %s22, %s29
    %s36 = sor.u32 %s34, %s35
    %p37 = scmp.eq.s32.totalorder %s36, 0
    %s39 = sadd.s32 %s38, 1
    %s40 = scalar_select %p37, %s38, %s39
    %p43 = pneg %p37
    %p44 = scmp.eq.s32.totalorder %s14, 3
    %p45 = por %p43, %p44
    %p46 = scmp.ne.s32.totalorder %s38, %s41
    %p47 = scmp.eq.s32.totalorder %s14, 0
    %p48 = por %p46, %p47
    %p49 = scmp.ne.s32.totalorder %s38, %s41
    %p50 = scmp.eq.s32.totalorder %s19, 3
    %p51 = por %p49, %p50
    %p52 = scmp.ne.s32.totalorder %s41, %s42
    %p53 = scmp.eq.s32.totalorder %s19, 0
    %p54 = por %p52, %p53
    %p55 = scmp.ne.s32.totalorder %s41, %s42
    %p56 = scmp.eq.s32.totalorder %s20, 3
    %p57 = por %p55, %p56
    %p59 = scmp.ne.s32.totalorder %s42, %s58
    %p60 = scmp.eq.s32.totalorder %s20, 0
    %p61 = por %p59, %p60
    %s62 = ssub.s32 %s21, %s33
    %p63 = scmp.eq.s32.totalorder %s62, 0
    %s65 = sadd.s32 %s64, 1
    %s66 = scalar_select %p63, %s64, %s65
    %p69 = pneg %p63
    %p70 = scmp.eq.s32.totalorder %s14, 3
    %p71 = por %p69, %p70
    %p72 = scmp.ne.s32.totalorder %s64, %s67
    %p73 = scmp.eq.s32.totalorder %s14, 0
    %p74 = por %p72, %p73
    %p75 = scmp.ne.s32.totalorder %s64, %s67
    %p76 = scmp.eq.s32.totalorder %s19, 3
    %p77 = por %p75, %p76
    %p78 = scmp.ne.s32.totalorder %s67, %s68
    %p79 = scmp.eq.s32.totalorder %s19, 0
    %p80 = por %p78, %p79
    %p81 = scmp.ne.s32.totalorder %s67, %s68
    %p82 = scmp.eq.s32.totalorder %s20, 3
    %p83 = por %p81, %p82
    %p85 = scmp.ne.s32.totalorder %s68, %s84
    %p86 = scmp.eq.s32.totalorder %s20, 0
    %p87 = por %p85, %p86
    %s89 = sadd.s32 %s88, 1
    %p92 = scmp.eq.s32.totalorder %s14, 3
    %p93 = scmp.ne.s32.totalorder %s88, %s90
    %p94 = scmp.eq.s32.totalorder %s14, 0
    %p95 = por %p93, %p94
    %p96 = scmp.ne.s32.totalorder %s88, %s90
    %p97 = scmp.eq.s32.totalorder %s19, 3
    %p98 = por %p96, %p97
    %p99 = scmp.ne.s32.totalorder %s90, %s91
    %p100 = scmp.eq.s32.totalorder %s19, 0
    %p101 = por %p99, %p100
    %p102 = scmp.ne.s32.totalorder %s90, %s91
    %p103 = scmp.eq.s32.totalorder %s20, 3
    %p104 = por %p102, %p103
    %p106 = scmp.ne.s32.totalorder %s91, %s105
    %p107 = scmp.eq.s32.totalorder %s20, 0
    %p108 = por %p106, %p107
    %s110 = sadd.s32 %s109, 1
    %p113 = scmp.eq.s32.totalorder %s14, 3
    %p114 = scmp.ne.s32.totalorder %s109, %s111
    %p115 = scmp.eq.s32.totalorder %s14, 0
    %p116 = por %p114, %p115
    %p117 = scmp.ne.s32.totalorder %s109, %s111
    %p118 = scmp.eq.s32.totalorder %s19, 3
    %p119 = por %p117, %p118
    %p120 = scmp.ne.s32.totalorder %s111, %s112
    %p121 = scmp.eq.s32.totalorder %s19, 0
    %p122 = por %p120, %p121
    %p123 = scmp.ne.s32.totalorder %s111, %s112
    %p124 = scmp.eq.s32.totalorder %s20, 3
    %p125 = por %p123, %p124
    %p127 = scmp.ne.s32.totalorder %s112, %s126
    %p128 = scmp.eq.s32.totalorder %s20, 0
    %p129 = por %p127, %p128
    %s131 = sadd.s32 %s130, 1
    %p134 = scmp.eq.s32.totalorder %s14, 3
    %p135 = scmp.ne.s32.totalorder %s130, %s132
    %p136 = scmp.eq.s32.totalorder %s14, 0
    %p137 = por %p135, %p136
    %p138 = scmp.ne.s32.totalorder %s130, %s132
    %p139 = scmp.eq.s32.totalorder %s19, 3
    %p140 = por %p138, %p139
    %p141 = scmp.ne.s32.totalorder %s132, %s133
    %p142 = scmp.eq.s32.totalorder %s19, 0
    %p143 = por %p141, %p142
    %p144 = scmp.ne.s32.totalorder %s132, %s133
    %p145 = scmp.eq.s32.totalorder %s20, 3
    %p146 = por %p144, %p145
    %p148 = scmp.ne.s32.totalorder %s133, %s147
    %p149 = scmp.eq.s32.totalorder %s20, 0
    %p150 = por %p148, %p149
    %s152 = sadd.s32 %s151, 1
    %p155 = scmp.eq.s32.totalorder %s14, 3
    %p156 = scmp.ne.s32.totalorder %s151, %s153
    %p157 = scmp.eq.s32.totalorder %s14, 0
    %p158 = por %p156, %p157
    %p159 = scmp.ne.s32.totalorder %s151, %s153
    %p160 = scmp.eq.s32.totalorder %s19, 3
    %p161 = por %p159, %p160
    %p162 = scmp.ne.s32.totalorder %s153, %s154
    %p163 = scmp.eq.s32.totalorder %s19, 0
    %p164 = por %p162, %p163
    %p165 = scmp.ne.s32.totalorder %s153, %s154
    %p166 = scmp.eq.s32.totalorder %s20, 3
    %p167 = por %p165, %p166
    %p169 = scmp.ne.s32.totalorder %s154, %s168
    %p170 = scmp.eq.s32.totalorder %s20, 0
    %p171 = por %p169, %p170
    %s173 = sadd.s32 %s172, 1
    %p176 = scmp.eq.s32.totalorder %s14, 3
    %p177 = scmp.ne.s32.totalorder %s172, %s174
    %p178 = scmp.eq.s32.totalorder %s14, 0
    %p179 = por %p177, %p178
    %p180 = scmp.ne.s32.totalorder %s172, %s174
    %p181 = scmp.eq.s32.totalorder %s19, 3
    %p182 = por %p180, %p181
    %p183 = scmp.ne.s32.totalorder %s174, %s175
    %p184 = scmp.eq.s32.totalorder %s19, 0
    %p185 = por %p183, %p184
    %p186 = scmp.ne.s32.totalorder %s174, %s175
    %p187 = scmp.eq.s32.totalorder %s20, 3
    %p188 = por %p186, %p187
    %p190 = scmp.ne.s32.totalorder %s175, %s189
    %p191 = scmp.eq.s32.totalorder %s20, 0
    %p192 = por %p190, %p191
    %s194 = sadd.s32 %s193, 1
    %p197 = scmp.eq.s32.totalorder %s14, 3
    %p198 = scmp.ne.s32.totalorder %s193, %s195
    %p199 = scmp.eq.s32.totalorder %s14, 0
    %p200 = por %p198, %p199
    %p201 = scmp.ne.s32.totalorder %s193, %s195
    %p202 = scmp.eq.s32.totalorder %s19, 3
    %p203 = por %p201, %p202
    %p204 = scmp.ne.s32.totalorder %s195, %s196
    %p205 = scmp.eq.s32.totalorder %s19, 0
    %p206 = por %p204, %p205
    %p207 = scmp.ne.s32.totalorder %s195, %s196
    %p208 = scmp.eq.s32.totalorder %s20, 3
    %p209 = por %p207, %p208
    %p211 = scmp.ne.s32.totalorder %s196, %s210
    %p212 = scmp.eq.s32.totalorder %s20, 0
    %p213 = por %p211, %p212
    %s214 = ssub.s32 %s21, %s33
    %s215 = ssub.s32 %s22, %s29
    %s216 = sor.u32 %s214, %s215
    %p217 = scmp.eq.s32.totalorder %s216, 0
    %s219 = sadd.s32 %s218, 1
    %s220 = scalar_select %p217, %s218, %s219
    %p223 = pneg %p217
    %p224 = scmp.eq.s32.totalorder %s14, 3
    %p225 = por %p223, %p224
    %p226 = scmp.ne.s32.totalorder %s218, %s221
    %p227 = scmp.eq.s32.totalorder %s14, 0
    %p228 = por %p226, %p227
    %p229 = scmp.ne.s32.totalorder %s218, %s221
    %p230 = scmp.eq.s32.totalorder %s19, 3
    %p231 = por %p229, %p230
    %p232 = scmp.ne.s32.totalorder %s221, %s222
    %p233 = scmp.eq.s32.totalorder %s19, 0
    %p234 = por %p232, %p233
    %p235 = scmp.ne.s32.totalorder %s221, %s222
    %p236 = scmp.eq.s32.totalorder %s20, 3
    %p237 = por %p235, %p236
    %p239 = scmp.ne.s32.totalorder %s222, %s238
    %p240 = scmp.eq.s32.totalorder %s20, 0
    %p241 = por %p239, %p240
    %p242 = scmp.le.s32.totalorder 1, %s14
    %p243 = scmp.lt.s32.totalorder %s14, 5
    %p244 = pnand %p242, %p243
    %p245 = pneg %p244
    // Predicated region
    $region9: #{bandsplit_forward.3} parent=5 // pred_check
      _
    $region10: #{bandsplit_forward.3} parent=5 // pred_check_branch
      %247 = sbr.rel (%p244) target = $region12
    $region11: #{bandsplit_forward.3} parent=5 // pred_region
      %s248 = ssub.s32 %s14, 1
      // Predicated region
      $region13: #{bandsplit_forward.3} parent=11 // pred_check
        %p249 = pneg %p101
      $region14: #{bandsplit_forward.3} parent=11 // pred_check_branch
        %251 = sbr.rel (%p249) target = $region16
      $region15: #{bandsplit_forward.3} parent=11 // pred_region
        _
      $region16: #{bandsplit_forward.3} parent=11 // pred_fallthru
        _
      // Predicated region
      $region17: #{bandsplit_forward.3} parent=11 // pred_check
        %p252 = pneg %p122
      $region18: #{bandsplit_forward.3} parent=11 // pred_check_branch
        %254 = sbr.rel (%p252) target = $region20
      $region19: #{bandsplit_forward.3} parent=11 // pred_region
        _
      $region20: #{bandsplit_forward.3} parent=11 // pred_fallthru
        _
      // Predicated region
      $region21: #{bandsplit_forward.3} parent=11 // pred_check
        %p255 = pneg %p143
      $region22: #{bandsplit_forward.3} parent=11 // pred_check_branch
        %257 = sbr.rel (%p255) target = $region24
      $region23: #{bandsplit_forward.3} parent=11 // pred_region
        _
      $region24: #{bandsplit_forward.3} parent=11 // pred_fallthru
        _
      // Predicated region
      $region25: #{bandsplit_forward.3} parent=11 // pred_check
        %p258 = pneg %p164
      $region26: #{bandsplit_forward.3} parent=11 // pred_check_branch
        %260 = sbr.rel (%p258) target = $region28
      $region27: #{bandsplit_forward.3} parent=11 // pred_region
        _
      $region28: #{bandsplit_forward.3} parent=11 // pred_fallthru
        _
      // Predicated region
      $region29: #{bandsplit_forward.3} parent=11 // pred_check
        %p261 = pneg %p185
      $region30: #{bandsplit_forward.3} parent=11 // pred_check_branch
        %263 = sbr.rel (%p261) target = $region32
      $region31: #{bandsplit_forward.3} parent=11 // pred_region
        _
      $region32: #{bandsplit_forward.3} parent=11 // pred_fallthru
        _
      // Predicated region
      $region33: #{bandsplit_forward.3} parent=11 // pred_check
        %p264 = pneg %p206
      $region34: #{bandsplit_forward.3} parent=11 // pred_check_branch
        %266 = sbr.rel (%p264) target = $region36
      $region35: #{bandsplit_forward.3} parent=11 // pred_region
        _
      $region36: #{bandsplit_forward.3} parent=11 // pred_fallthru
        _
    $region12: #{bandsplit_forward.3} parent=5 // pred_fallthru
      _
    %p267 = scmp.lt.s32.totalorder %s14, 4
    // Predicated region
    $region37: #{bandsplit_forward.3} parent=5 // pred_check
      %p268 = pneg %p267
    $region38: #{bandsplit_forward.3} parent=5 // pred_check_branch
      %270 = sbr.rel (%p268) target = $region40
    $region39: #{bandsplit_forward.3} parent=5 // pred_region
      // Predicated region
      $region41: #{bandsplit_forward.3} parent=39 // pred_check
        %p271 = pneg %p48
      $region42: #{bandsplit_forward.3} parent=39 // pred_check_branch
        %273 = sbr.rel (%p271) target = $region44
      $region43: #{bandsplit_forward.3} parent=39 // pred_region
        %p274 = scmp.lt.s32.totalorder %s21, 1
        %s275 = scalar_select %p274, %s21, 1
        %p276 = scmp.lt.s32.totalorder %s22, 1
        %s277 = scalar_select %p276, %s22, 1
        %s278 = smul.addr %s277, 5
        %s279 = smul.addr %s275, 10
        %s280 = sadd.s32 %s278, %s279
        %s281 = smul.addr %s280, 8
        %s282 = scalar_lea.vmem %s0, %s281
      $region44: #{bandsplit_forward.3} parent=39 // pred_fallthru
        _
      // Predicated region
      $region45: #{bandsplit_forward.3} parent=39 // pred_check
        %p283 = pneg %p74
      $region46: #{bandsplit_forward.3} parent=39 // pred_check_branch
        %285 = sbr.rel (%p283) target = $region48
      $region47: #{bandsplit_forward.3} parent=39 // pred_region
        %p286 = scmp.lt.s32.totalorder %s21, 1
        %s287 = scalar_select %p286, %s21, 1
        %s288 = smul.addr %s287, 5
        %s289 = smul.addr %s288, 2
        %s290 = scalar_lea.vmem %s1, %s289
      $region48: #{bandsplit_forward.3} parent=39 // pred_fallthru
        _
    $region40: #{bandsplit_forward.3} parent=5 // pred_fallthru
      _
    %p291 = scmp.le.s32.totalorder 1, %s14
    %p292 = scmp.lt.s32.totalorder %s14, 5
    %p293 = pnand %p291, %p292
    %p294 = pneg %p293
    // Predicated region
    $region49: #{bandsplit_forward.3} parent=5 // pred_check
      _
    $region50: #{bandsplit_forward.3} parent=5 // pred_check_branch
      %296 = sbr.rel (%p293) target = $region52
    $region51: #{bandsplit_forward.3} parent=5 // pred_region
      %s297 = ssub.s32 %s14, 1
      %p298 = scmp.lt.s32.totalorder %s23, 1
      %s299 = scalar_select %p298, %s23, 1
      %p300 = scmp.lt.s32.totalorder %s24, 1
      %s301 = scalar_select %p300, %s24, 1
      %s302 = smul.addr %s301, 5
      %s303 = smul.addr %s299, 10
      %s304 = sadd.s32 %s302, %s303
      %s305 = smul.addr %s304, 8
      %s306 = scalar_lea.vmem %s0, %s305
      %p307 = pneg %p54
      %p308 = pneg %p51
      %p309 = scmp.lt.s32.totalorder %s23, 1
      %s310 = scalar_select %p309, %s23, 1
      %s311 = smul.addr %s310, 5
      %s312 = smul.addr %s311, 2
      %s313 = scalar_lea.vmem %s1, %s312
      %p314 = pneg %p80
      %p315 = pneg %p77
      %p316 = pneg %p101
      %p317 = pneg %p98
      %p318 = pneg %p122
      %p319 = pneg %p119
      %p320 = pneg %p143
      %p321 = pneg %p140
      %p322 = pneg %p164
      %p323 = pneg %p161
      %p324 = pneg %p185
      %p325 = pneg %p182
      %p326 = pneg %p206
      %p327 = pneg %p203
      %p328 = pneg %p234
      %p329 = pneg %p231
      %p330 = scmp.lt.s32.totalorder %s23, 1
      %s331 = scalar_select %p330, %s23, 1
      %p332 = scmp.lt.s32.totalorder %s24, 1
      %s333 = scalar_select %p332, %s24, 1
      %s334 = smul.addr %s333, 8
      %s335 = smul.addr %s331, 16
      %s336 = sadd.s32 %s334, %s335
      %s337 = smul.addr %s336, 8
      %s338 = scalar_lea.vmem %s8, %s337
      %p339 = scmp.lt.s32.totalorder %s23, 1
      %s340 = scalar_select %p339, %s23, 1
      %p341 = scmp.lt.s32.totalorder %s24, 1
      %s342 = scalar_select %p341, %s24, 1
      %s343 = smul.addr %s342, 5
      %s344 = smul.addr %s340, 10
      %s345 = sadd.s32 %s343, %s344
      %s346 = smul.addr %s345, 8
      %s347 = scalar_lea.vmem %s0, %s346
      %p348 = scmp.lt.s32.totalorder %s23, 1
      %s349 = scalar_select %p348, %s23, 1
      %s350 = smul.addr %s349, 5
      %s351 = smul.addr %s350, 2
      %s352 = scalar_lea.vmem %s1, %s351
      %p353 = scmp.lt.s32.totalorder %s23, 1
      %s354 = scalar_select %p353, %s23, 1
      %p355 = scmp.lt.s32.totalorder %s24, 1
      %s356 = scalar_select %p355, %s24, 1
      %s357 = smul.addr %s356, 8
      %s358 = smul.addr %s354, 16
      %s359 = sadd.s32 %s357, %s358
      %s360 = smul.addr %s359, 8
      %s361 = scalar_lea.vmem %s8, %s360
      %v362 = vld [vmem:[%s352] ss:$2 sm:$0x1f]
      %s363 = scalar_lea.vmem %s352, 1
      %v364 = vld [vmem:[%s363] ss:$2 sm:$0x1f]
      %v365 = vld [vmem:[%s347] sm:$0xff]
      %v366 = vld [vmem:[%s347 + $0x8] sm:$0xff]
      %v367 = vld [vmem:[%s347 + $0x10] sm:$0xff]
      %v368 = vld [vmem:[%s347 + $0x18] sm:$0xff]
      %v369 = vld [vmem:[%s347 + $0x20] sm:$0xff]
      %v371 = vlaneseq
      %v372 = vshrl.u32 %v371, 7
      %v373 = vsub.s32 0, %v372
      %v374 = vrot.slane %v362, %v373
      %v375 = vlaneseq
      %v376 = vshrl.u32 %v375, 7
      %v377 = vsub.s32 1, %v376
      %v378 = vrot.slane %v362, %v377
      %v379 = vlaneseq
      %v380 = vshrl.u32 %v379, 7
      %v381 = vsub.s32 2, %v380
      %v382 = vrot.slane %v362, %v381
      %v383 = vlaneseq
      %v384 = vshrl.u32 %v383, 7
      %v385 = vsub.s32 3, %v384
      %v386 = vrot.slane %v362, %v385
      %v387 = vlaneseq
      %v388 = vshrl.u32 %v387, 7
      %v389 = vsub.s32 4, %v388
      %v390 = vrot.slane %v362, %v389
      %v396 = vmul.f32 %v365, %v374
      %v397 = vmul.f32 %v366, %v378
      %v398 = vmul.f32 %v367, %v382
      %v399 = vmul.f32 %v368, %v386
      %v400 = vmul.f32 %v369, %v390
      %v402 = vlaneseq
      %v403 = vshrl.u32 %v402, 7
      %v404 = vsub.s32 0, %v403
      %v405 = vrot.slane %v364, %v404
      %v406 = vlaneseq
      %v407 = vshrl.u32 %v406, 7
      %v408 = vsub.s32 1, %v407
      %v409 = vrot.slane %v364, %v408
      %v410 = vlaneseq
      %v411 = vshrl.u32 %v410, 7
      %v412 = vsub.s32 2, %v411
      %v413 = vrot.slane %v364, %v412
      %v414 = vlaneseq
      %v415 = vshrl.u32 %v414, 7
      %v416 = vsub.s32 3, %v415
      %v417 = vrot.slane %v364, %v416
      %v418 = vlaneseq
      %v419 = vshrl.u32 %v418, 7
      %v420 = vsub.s32 4, %v419
      %v421 = vrot.slane %v364, %v420
      %v427 = vadd.f32 %v396, %v405
      %v428 = vadd.f32 %v397, %v409
      %v429 = vadd.f32 %v398, %v413
      %v430 = vadd.f32 %v399, %v417
      %v431 = vadd.f32 %v400, %v421
      %v432 = vld [vmem:[%s2] sm:$0xff]
      %v433 = vld [vmem:[%s2 + $0x8] sm:$0xff]
      %v434 = vld [vmem:[%s2 + $0x10] sm:$0xff]
      %v435 = vld [vmem:[%s2 + $0x18] sm:$0xff]
      %v436 = vld [vmem:[%s2 + $0x20] sm:$0xff]
      %v437 = vld [vmem:[%s2 + $0x28] sm:$0xff]
      %v438 = vld [vmem:[%s2 + $0x30] sm:$0xff]
      %v439 = vld [vmem:[%s2 + $0x38] sm:$0xff]
      %v440 = vld [vmem:[%s2 + $0x40] sm:$0xff]
      %v441 = vld [vmem:[%s2 + $0x48] sm:$0xff]
      %v442 = vld [vmem:[%s2 + $0x50] sm:$0xff]
      %v443 = vld [vmem:[%s2 + $0x58] sm:$0xff]
      %v444 = vld [vmem:[%s2 + $0x60] sm:$0xff]
      %v445 = vld [vmem:[%s2 + $0x68] sm:$0xff]
      %v446 = vld [vmem:[%s2 + $0x70] sm:$0xff]
      %v447 = vld [vmem:[%s2 + $0x78] sm:$0xff]
      %v448 = vld [vmem:[%s2 + $0x80] sm:$0xff]
      %v449 = vld [vmem:[%s2 + $0x88] sm:$0xff]
      %v450 = vld [vmem:[%s2 + $0x90] sm:$0xff]
      %v451 = vld [vmem:[%s2 + $0x98] sm:$0xff]
      %v452 = vld [vmem:[%s2 + $0xa0] sm:$0xff]
      %v453 = vld [vmem:[%s2 + $0xa8] sm:$0xff]
      %v454 = vld [vmem:[%s2 + $0xb0] sm:$0xff]
      %v455 = vld [vmem:[%s2 + $0xb8] sm:$0xff]
      %v456 = vld [vmem:[%s2 + $0xc0] sm:$0xff]
      %v457 = vld [vmem:[%s2 + $0xc8] sm:$0xff]
      %v458 = vld [vmem:[%s2 + $0xd0] sm:$0xff]
      %v459 = vld [vmem:[%s2 + $0xd8] sm:$0xff]
      %v460 = vld [vmem:[%s2 + $0xe0] sm:$0xff]
      %v461 = vld [vmem:[%s2 + $0xe8] sm:$0xff]
      %v462 = vld [vmem:[%s2 + $0xf0] sm:$0xff]
      %v463 = vld [vmem:[%s2 + $0xf8] sm:$0xff]
      %v464 = vld [vmem:[%s2 + $0x100] sm:$0xff]
      %v465 = vld [vmem:[%s2 + $0x108] sm:$0xff]
      %v466 = vld [vmem:[%s2 + $0x110] sm:$0xff]
      %v467 = vld [vmem:[%s2 + $0x118] sm:$0xff]
      %v468 = vld [vmem:[%s2 + $0x120] sm:$0xff]
      %v469 = vld [vmem:[%s2 + $0x128] sm:$0xff]
      %v470 = vld [vmem:[%s2 + $0x130] sm:$0xff]
      %v471 = vld [vmem:[%s2 + $0x138] sm:$0xff]
      %v472 = vld [vmem:[%s2 + $0x140] sm:$0xff]
      %v473 = vld [vmem:[%s2 + $0x148] sm:$0xff]
      %v474 = vld [vmem:[%s2 + $0x150] sm:$0xff]
      %v475 = vld [vmem:[%s2 + $0x158] sm:$0xff]
      %v476 = vld [vmem:[%s2 + $0x160] sm:$0xff]
      %v477 = vld [vmem:[%s2 + $0x168] sm:$0xff]
      %v478 = vld [vmem:[%s2 + $0x170] sm:$0xff]
      %v479 = vld [vmem:[%s2 + $0x178] sm:$0xff]
      %v480 = vld [vmem:[%s2 + $0x180] sm:$0xff]
      %v481 = vld [vmem:[%s2 + $0x188] sm:$0xff]
      %v482 = vld [vmem:[%s2 + $0x190] sm:$0xff]
      %v483 = vld [vmem:[%s2 + $0x198] sm:$0xff]
      %v484 = vld [vmem:[%s2 + $0x1a0] sm:$0xff]
      %v485 = vld [vmem:[%s2 + $0x1a8] sm:$0xff]
      %v486 = vld [vmem:[%s2 + $0x1b0] sm:$0xff]
      %v487 = vld [vmem:[%s2 + $0x1b8] sm:$0xff]
      %v488 = vld [vmem:[%s2 + $0x1c0] sm:$0xff]
      %v489 = vld [vmem:[%s2 + $0x1c8] sm:$0xff]
      %v490 = vld [vmem:[%s2 + $0x1d0] sm:$0xff]
      %v491 = vld [vmem:[%s2 + $0x1d8] sm:$0xff]
      %v492 = vld [vmem:[%s2 + $0x1e0] sm:$0xff]
      %v493 = vld [vmem:[%s2 + $0x1e8] sm:$0xff]
      %v494 = vld [vmem:[%s2 + $0x1f0] sm:$0xff]
      %v495 = vld [vmem:[%s2 + $0x1f8] sm:$0xff]
      %496 = vmatprep.subr.mxu0 %v433
      %497 = vmatpush1.msra.mxu0 %v432
      %498 = vmatprep.subr.mxu0 %v437
      %499 = vmatpush1.msra.mxu0 %v436
      %500 = vmatprep.subr.mxu0 %v441
      %501 = vmatpush1.msra.mxu0 %v440
      %502 = vmatprep.subr.mxu0 %v445
      %503 = vmatpush1.msra.mxu0 %v444
      %504 = vmatprep.subr.mxu0 %v449
      %505 = vmatpush1.msra.mxu0 %v448
      %506 = vmatprep.subr.mxu0 %v453
      %507 = vmatpush1.msra.mxu0 %v452
      %508 = vmatprep.subr.mxu0 %v457
      %509 = vmatpush1.msra.mxu0 %v456
      %510 = vmatprep.subr.mxu0 %v461
      %511 = vmatpush1.msra.mxu0 %v460
      %512 = vmatprep.subr.mxu0 %v465
      %513 = vmatpush1.msra.mxu0 %v464
      %514 = vmatprep.subr.mxu0 %v469
      %515 = vmatpush1.msra.mxu0 %v468
      %516 = vmatprep.subr.mxu0 %v473
      %517 = vmatpush1.msra.mxu0 %v472
      %518 = vmatprep.subr.mxu0 %v477
      %519 = vmatpush1.msra.mxu0 %v476
      %520 = vmatprep.subr.mxu0 %v481
      %521 = vmatpush1.msra.mxu0 %v480
      %522 = vmatprep.subr.mxu0 %v485
      %523 = vmatpush1.msra.mxu0 %v484
      %524 = vmatprep.subr.mxu0 %v489
      %525 = vmatpush1.msra.mxu0 %v488
      %526 = vmatprep.subr.mxu0 %v493
      %527 = vmatpush1.msra.mxu0 %v492
      %528 = vmatprep.subr.mxu0 0.0
      %529 = vmatpush1.msra.mxu0 0.0
      %530 = vmatprep.subr.mxu0 0.0
      %531 = vmatpush1.msra.mxu0 0.0
      %532 = vmatprep.subr.mxu0 0.0
      %533 = vmatpush1.msra.mxu0 0.0
      %534 = vmatprep.subr.mxu0 0.0
      %535 = vmatpush1.msra.mxu0 0.0
      %536 = vmatprep.subr.mxu0 0.0
      %537 = vmatpush1.msra.mxu0 0.0
      %538 = vmatprep.subr.mxu0 0.0
      %539 = vmatpush1.msra.mxu0 0.0
      %540 = vmatprep.subr.mxu0 0.0
      %541 = vmatpush1.msra.mxu0 0.0
      %542 = vmatprep.subr.mxu0 0.0
      %543 = vmatpush1.msra.mxu0 0.0
      %544 = vmatprep.subr.mxu0 0.0
      %545 = vmatpush1.msra.mxu0 0.0
      %546 = vmatprep.subr.mxu0 0.0
      %547 = vmatpush1.msra.mxu0 0.0
      %548 = vmatprep.subr.mxu0 0.0
      %549 = vmatpush1.msra.mxu0 0.0
      %550 = vmatprep.subr.mxu0 0.0
      %551 = vmatpush1.msra.mxu0 0.0
      %552 = vmatprep.subr.mxu0 0.0
      %553 = vmatpush1.msra.mxu0 0.0
      %554 = vmatprep.subr.mxu0 0.0
      %555 = vmatpush1.msra.mxu0 0.0
      %556 = vmatprep.subr.mxu0 0.0
      %557 = vmatpush1.msra.mxu0 0.0
      %558 = vmatprep.subr.mxu0 0.0
      %559 = vmatpush1.msra.mxu0 0.0
      %560 = vmatprep.mubr.f32.mxu0 0.0
      %561 = vmatmul.mubr.f32.gmra.mrb[0].mxu0 %v427
      %v562 = vpop.f32.mrb[0].mxu0
      %v563 = vadd.f32 0.0, %v562
      %v564 = vpop.f32.mrb[0].mxu0
      %v565 = vadd.f32 0.0, %v564
      %566 = vdwg.mxu0
      %567 = vmatprep.subr.mxu0 %v435
      %568 = vmatpush1.msra.mxu0 %v434
      %569 = vmatprep.subr.mxu0 %v439
      %570 = vmatpush1.msra.mxu0 %v438
      %571 = vmatprep.subr.mxu0 %v443
      %572 = vmatpush1.msra.mxu0 %v442
      %573 = vmatprep.subr.mxu0 %v447
      %574 = vmatpush1.msra.mxu0 %v446
      %575 = vmatprep.subr.mxu0 %v451
      %576 = vmatpush1.msra.mxu0 %v450
      %577 = vmatprep.subr.mxu0 %v455
      %578 = vmatpush1.msra.mxu0 %v454
      %579 = vmatprep.subr.mxu0 %v459
      %580 = vmatpush1.msra.mxu0 %v458
      %581 = vmatprep.subr.mxu0 %v463
      %582 = vmatpush1.msra.mxu0 %v462
      %583 = vmatprep.subr.mxu0 %v467
      %584 = vmatpush1.msra.mxu0 %v466
      %585 = vmatprep.subr.mxu0 %v471
      %586 = vmatpush1.msra.mxu0 %v470
      %587 = vmatprep.subr.mxu0 %v475
      %588 = vmatpush1.msra.mxu0 %v474
      %589 = vmatprep.subr.mxu0 %v479
      %590 = vmatpush1.msra.mxu0 %v478
      %591 = vmatprep.subr.mxu0 %v483
      %592 = vmatpush1.msra.mxu0 %v482
      %593 = vmatprep.subr.mxu0 %v487
      %594 = vmatpush1.msra.mxu0 %v486
      %595 = vmatprep.subr.mxu0 %v491
      %596 = vmatpush1.msra.mxu0 %v490
      %597 = vmatprep.subr.mxu0 %v495
      %598 = vmatpush1.msra.mxu0 %v494
      %599 = vmatprep.subr.mxu0 0.0
      %600 = vmatpush1.msra.mxu0 0.0
      %601 = vmatprep.subr.mxu0 0.0
      %602 = vmatpush1.msra.mxu0 0.0
      %603 = vmatprep.subr.mxu0 0.0
      %604 = vmatpush1.msra.mxu0 0.0
      %605 = vmatprep.subr.mxu0 0.0
      %606 = vmatpush1.msra.mxu0 0.0
      %607 = vmatprep.subr.mxu0 0.0
      %608 = vmatpush1.msra.mxu0 0.0
      %609 = vmatprep.subr.mxu0 0.0
      %610 = vmatpush1.msra.mxu0 0.0
      %611 = vmatprep.subr.mxu0 0.0
      %612 = vmatpush1.msra.mxu0 0.0
      %613 = vmatprep.subr.mxu0 0.0
      %614 = vmatpush1.msra.mxu0 0.0
      %615 = vmatprep.subr.mxu0 0.0
      %616 = vmatpush1.msra.mxu0 0.0
      %617 = vmatprep.subr.mxu0 0.0
      %618 = vmatpush1.msra.mxu0 0.0
      %619 = vmatprep.subr.mxu0 0.0
      %620 = vmatpush1.msra.mxu0 0.0
      %621 = vmatprep.subr.mxu0 0.0
      %622 = vmatpush1.msra.mxu0 0.0
      %623 = vmatprep.subr.mxu0 0.0
      %624 = vmatpush1.msra.mxu0 0.0
      %625 = vmatprep.subr.mxu0 0.0
      %626 = vmatpush1.msra.mxu0 0.0
      %627 = vmatprep.subr.mxu0 0.0
      %628 = vmatpush1.msra.mxu0 0.0
      %629 = vmatprep.subr.mxu0 0.0
      %630 = vmatpush1.msra.mxu0 0.0
      %631 = vmatprep.mubr.f32.mxu0 0.0
      %632 = vmatmul.mubr.f32.gmra.mrb[0].mxu0 %v427
      %v633 = vpop.f32.mrb[0].mxu0
      %v634 = vadd.f32 0.0, %v633
      %v635 = vpop.f32.mrb[0].mxu0
      %v636 = vadd.f32 0.0, %v635
      %637 = vdwg.mxu0
      %v638 = vld [vmem:[%s3] sm:$0xff]
      %v639 = vld [vmem:[%s3 + $0x8] sm:$0xff]
      %v640 = vld [vmem:[%s3 + $0x10] sm:$0xff]
      %v641 = vld [vmem:[%s3 + $0x18] sm:$0xff]
      %v642 = vld [vmem:[%s3 + $0x20] sm:$0xff]
      %v643 = vld [vmem:[%s3 + $0x28] sm:$0xff]
      %v644 = vld [vmem:[%s3 + $0x30] sm:$0xff]
      %v645 = vld [vmem:[%s3 + $0x38] sm:$0xff]
      %v646 = vld [vmem:[%s3 + $0x40] sm:$0xff]
      %v647 = vld [vmem:[%s3 + $0x48] sm:$0xff]
      %v648 = vld [vmem:[%s3 + $0x50] sm:$0xff]
      %v649 = vld [vmem:[%s3 + $0x58] sm:$0xff]
      %v650 = vld [vmem:[%s3 + $0x60] sm:$0xff]
      %v651 = vld [vmem:[%s3 + $0x68] sm:$0xff]
      %v652 = vld [vmem:[%s3 + $0x70] sm:$0xff]
      %v653 = vld [vmem:[%s3 + $0x78] sm:$0xff]
      %v654 = vld [vmem:[%s3 + $0x80] sm:$0xff]
      %v655 = vld [vmem:[%s3 + $0x88] sm:$0xff]
      %v656 = vld [vmem:[%s3 + $0x90] sm:$0xff]
      %v657 = vld [vmem:[%s3 + $0x98] sm:$0xff]
      %v658 = vld [vmem:[%s3 + $0xa0] sm:$0xff]
      %v659 = vld [vmem:[%s3 + $0xa8] sm:$0xff]
      %v660 = vld [vmem:[%s3 + $0xb0] sm:$0xff]
      %v661 = vld [vmem:[%s3 + $0xb8] sm:$0xff]
      %v662 = vld [vmem:[%s3 + $0xc0] sm:$0xff]
      %v663 = vld [vmem:[%s3 + $0xc8] sm:$0xff]
      %v664 = vld [vmem:[%s3 + $0xd0] sm:$0xff]
      %v665 = vld [vmem:[%s3 + $0xd8] sm:$0xff]
      %v666 = vld [vmem:[%s3 + $0xe0] sm:$0xff]
      %v667 = vld [vmem:[%s3 + $0xe8] sm:$0xff]
      %v668 = vld [vmem:[%s3 + $0xf0] sm:$0xff]
      %v669 = vld [vmem:[%s3 + $0xf8] sm:$0xff]
      %670 = vmatprep.subr.mxu0 %v639
      %671 = vmatpush1.msra.mxu0 %v638
      %672 = vmatprep.subr.mxu0 %v641
      %673 = vmatpush1.msra.mxu0 %v640
      %674 = vmatprep.subr.mxu0 %v643
      %675 = vmatpush1.msra.mxu0 %v642
      %676 = vmatprep.subr.mxu0 %v645
      %677 = vmatpush1.msra.mxu0 %v644
      %678 = vmatprep.subr.mxu0 %v647
      %679 = vmatpush1.msra.mxu0 %v646
      %680 = vmatprep.subr.mxu0 %v649
      %681 = vmatpush1.msra.mxu0 %v648
      %682 = vmatprep.subr.mxu0 %v651
      %683 = vmatpush1.msra.mxu0 %v650
      %684 = vmatprep.subr.mxu0 %v653
      %685 = vmatpush1.msra.mxu0 %v652
      %686 = vmatprep.subr.mxu0 %v655
      %687 = vmatpush1.msra.mxu0 %v654
      %688 = vmatprep.subr.mxu0 %v657
      %689 = vmatpush1.msra.mxu0 %v656
      %690 = vmatprep.subr.mxu0 %v659
      %691 = vmatpush1.msra.mxu0 %v658
      %692 = vmatprep.subr.mxu0 %v661
      %693 = vmatpush1.msra.mxu0 %v660
      %694 = vmatprep.subr.mxu0 %v663
      %695 = vmatpush1.msra.mxu0 %v662
      %696 = vmatprep.subr.mxu0 %v665
      %697 = vmatpush1.msra.mxu0 %v664
      %698 = vmatprep.subr.mxu0 %v667
      %699 = vmatpush1.msra.mxu0 %v666
      %700 = vmatprep.subr.mxu0 %v669
      %701 = vmatpush1.msra.mxu0 %v668
      %702 = vmatprep.subr.mxu0 0.0
      %703 = vmatpush1.msra.mxu0 0.0
      %704 = vmatprep.subr.mxu0 0.0
      %705 = vmatpush1.msra.mxu0 0.0
      %706 = vmatprep.subr.mxu0 0.0
      %707 = vmatpush1.msra.mxu0 0.0
      %708 = vmatprep.subr.mxu0 0.0
      %709 = vmatpush1.msra.mxu0 0.0
      %710 = vmatprep.subr.mxu0 0.0
      %711 = vmatpush1.msra.mxu0 0.0
      %712 = vmatprep.subr.mxu0 0.0
      %713 = vmatpush1.msra.mxu0 0.0
      %714 = vmatprep.subr.mxu0 0.0
      %715 = vmatpush1.msra.mxu0 0.0
      %716 = vmatprep.subr.mxu0 0.0
      %717 = vmatpush1.msra.mxu0 0.0
      %718 = vmatprep.subr.mxu0 0.0
      %719 = vmatpush1.msra.mxu0 0.0
      %720 = vmatprep.subr.mxu0 0.0
      %721 = vmatpush1.msra.mxu0 0.0
      %722 = vmatprep.subr.mxu0 0.0
      %723 = vmatpush1.msra.mxu0 0.0
      %724 = vmatprep.subr.mxu0 0.0
      %725 = vmatpush1.msra.mxu0 0.0
      %726 = vmatprep.subr.mxu0 0.0
      %727 = vmatpush1.msra.mxu0 0.0
      %728 = vmatprep.subr.mxu0 0.0
      %729 = vmatpush1.msra.mxu0 0.0
      %730 = vmatprep.subr.mxu0 0.0
      %731 = vmatpush1.msra.mxu0 0.0
      %732 = vmatprep.subr.mxu0 0.0
      %733 = vmatpush1.msra.mxu0 0.0
      %734 = vmatprep.mubr.f32.mxu0 0.0
      %735 = vmatmul.mubr.f32.gmra.mrb[0].mxu0 %v428
      %v736 = vpop.f32.mrb[0].mxu0
      %v737 = vadd.f32 0.0, %v736
      %v738 = vpop.f32.mrb[0].mxu0
      %v739 = vadd.f32 0.0, %v738
      %740 = vdwg.mxu0
      %v741 = vld [vmem:[%s4] sm:$0xff]
      %v742 = vld [vmem:[%s4 + $0x8] sm:$0xff]
      %v743 = vld [vmem:[%s4 + $0x10] sm:$0xff]
      %v744 = vld [vmem:[%s4 + $0x18] sm:$0xff]
      %v745 = vld [vmem:[%s4 + $0x20] sm:$0xff]
      %v746 = vld [vmem:[%s4 + $0x28] sm:$0xff]
      %v747 = vld [vmem:[%s4 + $0x30] sm:$0xff]
      %v748 = vld [vmem:[%s4 + $0x38] sm:$0xff]
      %v749 = vld [vmem:[%s4 + $0x40] sm:$0xff]
      %v750 = vld [vmem:[%s4 + $0x48] sm:$0xff]
      %v751 = vld [vmem:[%s4 + $0x50] sm:$0xff]
      %v752 = vld [vmem:[%s4 + $0x58] sm:$0xff]
      %v753 = vld [vmem:[%s4 + $0x60] sm:$0xff]
      %v754 = vld [vmem:[%s4 + $0x68] sm:$0xff]
      %v755 = vld [vmem:[%s4 + $0x70] sm:$0xff]
      %v756 = vld [vmem:[%s4 + $0x78] sm:$0xff]
      %757 = vmatprep.subr.mxu0 0.0
      %758 = vmatpush1.msra.mxu0 %v741
      %759 = vmatprep.subr.mxu0 0.0
      %760 = vmatpush1.msra.mxu0 %v742
      %761 = vmatprep.subr.mxu0 0.0
      %762 = vmatpush1.msra.mxu0 %v743
      %763 = vmatprep.subr.mxu0 0.0
      %764 = vmatpush1.msra.mxu0 %v744
      %765 = vmatprep.subr.mxu0 0.0
      %766 = vmatpush1.msra.mxu0 %v745
      %767 = vmatprep.subr.mxu0 0.0
      %768 = vmatpush1.msra.mxu0 %v746
      %769 = vmatprep.subr.mxu0 0.0
      %770 = vmatpush1.msra.mxu0 %v747
      %771 = vmatprep.subr.mxu0 0.0
      %772 = vmatpush1.msra.mxu0 %v748
      %773 = vmatprep.subr.mxu0 0.0
      %774 = vmatpush1.msra.mxu0 %v749
      %775 = vmatprep.subr.mxu0 0.0
      %776 = vmatpush1.msra.mxu0 %v750
      %777 = vmatprep.subr.mxu0 0.0
      %778 = vmatpush1.msra.mxu0 %v751
      %779 = vmatprep.subr.mxu0 0.0
      %780 = vmatpush1.msra.mxu0 %v752
      %781 = vmatprep.subr.mxu0 0.0
      %782 = vmatpush1.msra.mxu0 %v753
      %783 = vmatprep.subr.mxu0 0.0
      %784 = vmatpush1.msra.mxu0 %v754
      %785 = vmatprep.subr.mxu0 0.0
      %786 = vmatpush1.msra.mxu0 %v755
      %787 = vmatprep.subr.mxu0 0.0
      %788 = vmatpush1.msra.mxu0 %v756
      %789 = vmatprep.subr.mxu0 0.0
      %790 = vmatpush1.msra.mxu0 0.0
      %791 = vmatprep.subr.mxu0 0.0
      %792 = vmatpush1.msra.mxu0 0.0
      %793 = vmatprep.subr.mxu0 0.0
      %794 = vmatpush1.msra.mxu0 0.0
      %795 = vmatprep.subr.mxu0 0.0
      %796 = vmatpush1.msra.mxu0 0.0
      %797 = vmatprep.subr.mxu0 0.0
      %798 = vmatpush1.msra.mxu0 0.0
      %799 = vmatprep.subr.mxu0 0.0
      %800 = vmatpush1.msra.mxu0 0.0
      %801 = vmatprep.subr.mxu0 0.0
      %802 = vmatpush1.msra.mxu0 0.0
      %803 = vmatprep.subr.mxu0 0.0
      %804 = vmatpush1.msra.mxu0 0.0
      %805 = vmatprep.subr.mxu0 0.0
      %806 = vmatpush1.msra.mxu0 0.0
      %807 = vmatprep.subr.mxu0 0.0
      %808 = vmatpush1.msra.mxu0 0.0
      %809 = vmatprep.subr.mxu0 0.0
      %810 = vmatpush1.msra.mxu0 0.0
      %811 = vmatprep.subr.mxu0 0.0
      %812 = vmatpush1.msra.mxu0 0.0
      %813 = vmatprep.subr.mxu0 0.0
      %814 = vmatpush1.msra.mxu0 0.0
      %815 = vmatprep.subr.mxu0 0.0
      %816 = vmatpush1.msra.mxu0 0.0
      %817 = vmatprep.subr.mxu0 0.0
      %818 = vmatpush1.msra.mxu0 0.0
      %819 = vmatprep.subr.mxu0 0.0
      %820 = vmatpush1.msra.mxu0 0.0
      %821 = vmatprep.mubr.f32.mxu0 0.0
      %822 = vmatmul.mubr.f32.gmra.mrb[0].mxu0 %v429
      %v823 = vpop.f32.mrb[0].mxu0
      %v824 = vadd.f32 0.0, %v823
      %v825 = vpop.f32.mrb[0].mxu0
      %826 = vdwg.mxu0
      %v827 = vld [vmem:[%s5] sm:$0xff]
      %v828 = vld [vmem:[%s5 + $0x8] sm:$0xff]
      %v829 = vld [vmem:[%s5 + $0x10] sm:$0xff]
      %v830 = vld [vmem:[%s5 + $0x18] sm:$0xff]
      %v831 = vld [vmem:[%s5 + $0x20] sm:$0xff]
      %v832 = vld [vmem:[%s5 + $0x28] sm:$0xff]
      %v833 = vld [vmem:[%s5 + $0x30] sm:$0xff]
      %v834 = vld [vmem:[%s5 + $0x38] sm:$0xff]
      %v835 = vld [vmem:[%s5 + $0x40] sm:$0xff]
      %v836 = vld [vmem:[%s5 + $0x48] sm:$0xff]
      %v837 = vld [vmem:[%s5 + $0x50] sm:$0xff]
      %v838 = vld [vmem:[%s5 + $0x58] sm:$0xff]
      %v839 = vld [vmem:[%s5 + $0x60] sm:$0xff]
      %v840 = vld [vmem:[%s5 + $0x68] sm:$0xff]
      %v841 = vld [vmem:[%s5 + $0x70] sm:$0xff]
      %v842 = vld [vmem:[%s5 + $0x78] sm:$0xff]
      %843 = vmatprep.subr.mxu0 0.0
      %844 = vmatpush1.msra.mxu0 %v827
      %845 = vmatprep.subr.mxu0 0.0
      %846 = vmatpush1.msra.mxu0 %v828
      %847 = vmatprep.subr.mxu0 0.0
      %848 = vmatpush1.msra.mxu0 %v829
      %849 = vmatprep.subr.mxu0 0.0
      %850 = vmatpush1.msra.mxu0 %v830
      %851 = vmatprep.subr.mxu0 0.0
      %852 = vmatpush1.msra.mxu0 %v831
      %853 = vmatprep.subr.mxu0 0.0
      %854 = vmatpush1.msra.mxu0 %v832
      %855 = vmatprep.subr.mxu0 0.0
      %856 = vmatpush1.msra.mxu0 %v833
      %857 = vmatprep.subr.mxu0 0.0
      %858 = vmatpush1.msra.mxu0 %v834
      %859 = vmatprep.subr.mxu0 0.0
      %860 = vmatpush1.msra.mxu0 %v835
      %861 = vmatprep.subr.mxu0 0.0
      %862 = vmatpush1.msra.mxu0 %v836
      %863 = vmatprep.subr.mxu0 0.0
      %864 = vmatpush1.msra.mxu0 %v837
      %865 = vmatprep.subr.mxu0 0.0
      %866 = vmatpush1.msra.mxu0 %v838
      %867 = vmatprep.subr.mxu0 0.0
      %868 = vmatpush1.msra.mxu0 %v839
      %869 = vmatprep.subr.mxu0 0.0
      %870 = vmatpush1.msra.mxu0 %v840
      %871 = vmatprep.subr.mxu0 0.0
      %872 = vmatpush1.msra.mxu0 %v841
      %873 = vmatprep.subr.mxu0 0.0
      %874 = vmatpush1.msra.mxu0 %v842
      %875 = vmatprep.subr.mxu0 0.0
      %876 = vmatpush1.msra.mxu0 0.0
      %877 = vmatprep.subr.mxu0 0.0
      %878 = vmatpush1.msra.mxu0 0.0
      %879 = vmatprep.subr.mxu0 0.0
      %880 = vmatpush1.msra.mxu0 0.0
      %881 = vmatprep.subr.mxu0 0.0
      %882 = vmatpush1.msra.mxu0 0.0
      %883 = vmatprep.subr.mxu0 0.0
      %884 = vmatpush1.msra.mxu0 0.0
      %885 = vmatprep.subr.mxu0 0.0
      %886 = vmatpush1.msra.mxu0 0.0
      %887 = vmatprep.subr.mxu0 0.0
      %888 = vmatpush1.msra.mxu0 0.0
      %889 = vmatprep.subr.mxu0 0.0
      %890 = vmatpush1.msra.mxu0 0.0
      %891 = vmatprep.subr.mxu0 0.0
      %892 = vmatpush1.msra.mxu0 0.0
      %893 = vmatprep.subr.mxu0 0.0
      %894 = vmatpush1.msra.mxu0 0.0
      %895 = vmatprep.subr.mxu0 0.0
      %896 = vmatpush1.msra.mxu0 0.0
      %897 = vmatprep.subr.mxu0 0.0
      %898 = vmatpush1.msra.mxu0 0.0
      %899 = vmatprep.subr.mxu0 0.0
      %900 = vmatpush1.msra.mxu0 0.0
      %901 = vmatprep.subr.mxu0 0.0
      %902 = vmatpush1.msra.mxu0 0.0
      %903 = vmatprep.subr.mxu0 0.0
      %904 = vmatpush1.msra.mxu0 0.0
      %905 = vmatprep.subr.mxu0 0.0
      %906 = vmatpush1.msra.mxu0 0.0
      %907 = vmatprep.mubr.f32.mxu0 0.0
      %908 = vmatmul.mubr.f32.gmra.mrb[0].mxu0 %v430
      %v909 = vpop.f32.mrb[0].mxu0
      %v910 = vadd.f32 0.0, %v909
      %v911 = vpop.f32.mrb[0].mxu0
      %912 = vdwg.mxu0
      %v913 = vld [vmem:[%s6] sm:$0xff]
      %v914 = vld [vmem:[%s6 + $0x8] sm:$0xff]
      %v915 = vld [vmem:[%s6 + $0x10] sm:$0xff]
      %v916 = vld [vmem:[%s6 + $0x18] sm:$0xff]
      %v917 = vld [vmem:[%s6 + $0x20] sm:$0xff]
      %v918 = vld [vmem:[%s6 + $0x28] sm:$0xff]
      %v919 = vld [vmem:[%s6 + $0x30] sm:$0xff]
      %v920 = vld [vmem:[%s6 + $0x38] sm:$0xff]
      %v921 = vld [vmem:[%s6 + $0x40] sm:$0xff]
      %v922 = vld [vmem:[%s6 + $0x48] sm:$0xff]
      %v923 = vld [vmem:[%s6 + $0x50] sm:$0xff]
      %v924 = vld [vmem:[%s6 + $0x58] sm:$0xff]
      %v925 = vld [vmem:[%s6 + $0x60] sm:$0xff]
      %v926 = vld [vmem:[%s6 + $0x68] sm:$0xff]
      %v927 = vld [vmem:[%s6 + $0x70] sm:$0xff]
      %v928 = vld [vmem:[%s6 + $0x78] sm:$0xff]
      %929 = vmatprep.subr.mxu0 0.0
      %930 = vmatpush1.msra.mxu0 %v913
      %931 = vmatprep.subr.mxu0 0.0
      %932 = vmatpush1.msra.mxu0 %v914
      %933 = vmatprep.subr.mxu0 0.0
      %934 = vmatpush1.msra.mxu0 %v915
      %935 = vmatprep.subr.mxu0 0.0
      %936 = vmatpush1.msra.mxu0 %v916
      %937 = vmatprep.subr.mxu0 0.0
      %938 = vmatpush1.msra.mxu0 %v917
      %939 = vmatprep.subr.mxu0 0.0
      %940 = vmatpush1.msra.mxu0 %v918
      %941 = vmatprep.subr.mxu0 0.0
      %942 = vmatpush1.msra.mxu0 %v919
      %943 = vmatprep.subr.mxu0 0.0
      %944 = vmatpush1.msra.mxu0 %v920
      %945 = vmatprep.subr.mxu0 0.0
      %946 = vmatpush1.msra.mxu0 %v921
      %947 = vmatprep.subr.mxu0 0.0
      %948 = vmatpush1.msra.mxu0 %v922
      %949 = vmatprep.subr.mxu0 0.0
      %950 = vmatpush1.msra.mxu0 %v923
      %951 = vmatprep.subr.mxu0 0.0
      %952 = vmatpush1.msra.mxu0 %v924
      %953 = vmatprep.subr.mxu0 0.0
      %954 = vmatpush1.msra.mxu0 %v925
      %955 = vmatprep.subr.mxu0 0.0
      %956 = vmatpush1.msra.mxu0 %v926
      %957 = vmatprep.subr.mxu0 0.0
      %958 = vmatpush1.msra.mxu0 %v927
      %959 = vmatprep.subr.mxu0 0.0
      %960 = vmatpush1.msra.mxu0 %v928
      %961 = vmatprep.subr.mxu0 0.0
      %962 = vmatpush1.msra.mxu0 0.0
      %963 = vmatprep.subr.mxu0 0.0
      %964 = vmatpush1.msra.mxu0 0.0
      %965 = vmatprep.subr.mxu0 0.0
      %966 = vmatpush1.msra.mxu0 0.0
      %967 = vmatprep.subr.mxu0 0.0
      %968 = vmatpush1.msra.mxu0 0.0
      %969 = vmatprep.subr.mxu0 0.0
      %970 = vmatpush1.msra.mxu0 0.0
      %971 = vmatprep.subr.mxu0 0.0
      %972 = vmatpush1.msra.mxu0 0.0
      %973 = vmatprep.subr.mxu0 0.0
      %974 = vmatpush1.msra.mxu0 0.0
      %975 = vmatprep.subr.mxu0 0.0
      %976 = vmatpush1.msra.mxu0 0.0
      %977 = vmatprep.subr.mxu0 0.0
      %978 = vmatpush1.msra.mxu0 0.0
      %979 = vmatprep.subr.mxu0 0.0
      %980 = vmatpush1.msra.mxu0 0.0
      %981 = vmatprep.subr.mxu0 0.0
      %982 = vmatpush1.msra.mxu0 0.0
      %983 = vmatprep.subr.mxu0 0.0
      %984 = vmatpush1.msra.mxu0 0.0
      %985 = vmatprep.subr.mxu0 0.0
      %986 = vmatpush1.msra.mxu0 0.0
      %987 = vmatprep.subr.mxu0 0.0
      %988 = vmatpush1.msra.mxu0 0.0
      %989 = vmatprep.subr.mxu0 0.0
      %990 = vmatpush1.msra.mxu0 0.0
      %991 = vmatprep.subr.mxu0 0.0
      %992 = vmatpush1.msra.mxu0 0.0
      %993 = vmatprep.mubr.f32.mxu0 0.0
      %994 = vmatmul.mubr.f32.gmra.mrb[0].mxu0 %v431
      %v995 = vpop.f32.mrb[0].mxu0
      %v996 = vadd.f32 0.0, %v995
      %v997 = vpop.f32.mrb[0].mxu0
      %998 = vdwg.mxu0
      %1001 = vrot.lane.b32.xlu0 %v737, 96
      %v1002 = vpop.permute.xlu0 %1001
      %1003 = vrot.lane.b32.xlu0 %v739, 96
      %v1004 = vpop.permute.xlu0 %1003
      %vm1005 = vcmask 785408
      %v1006 = vsel %vm1005, %v1002, %v1004
      %1011 = vrot.lane.b32.xlu0 %v824, 96
      %v1012 = vpop.permute.xlu0 %1011
      %1015 = vrot.lane.b32.xlu0 %v910, 96
      %v1016 = vpop.permute.xlu0 %1015
      %1019 = vrot.lane.b32.xlu0 %v996, 64
      %v1020 = vpop.permute.xlu0 %1019
      %v1022 = vsel %vm1005, %v636, %v1002
      %v1023 = vsel %vm1005, %v1004, %v1012
      %v1024 = vsel %vm1005, %v1012, %v1016
      %vm1025 = vcmask 523264
      %v1026 = vsel %vm1025, %v1016, %v1020
      %v1027 = vld [vmem:[%s7] sm:$0xff]
      %v1029 = vlaneseq
      %v1030 = vshrl.u32 %v1029, 7
      %v1031 = vsub.s32 0, %v1030
      %v1032 = vrot.slane %v1027, %v1031
      %v1033 = vlaneseq
      %v1034 = vshrl.u32 %v1033, 7
      %v1035 = vsub.s32 1, %v1034
      %v1036 = vrot.slane %v1027, %v1035
      %v1037 = vlaneseq
      %v1038 = vshrl.u32 %v1037, 7
      %v1039 = vsub.s32 2, %v1038
      %v1040 = vrot.slane %v1027, %v1039
      %v1041 = vlaneseq
      %v1042 = vshrl.u32 %v1041, 7
      %v1043 = vsub.s32 3, %v1042
      %v1044 = vrot.slane %v1027, %v1043
      %v1045 = vlaneseq
      %v1046 = vshrl.u32 %v1045, 7
      %v1047 = vsub.s32 4, %v1046
      %v1048 = vrot.slane %v1027, %v1047
      %v1049 = vlaneseq
      %v1050 = vshrl.u32 %v1049, 7
      %v1051 = vsub.s32 5, %v1050
      %v1052 = vrot.slane %v1027, %v1051
      %v1053 = vlaneseq
      %v1054 = vshrl.u32 %v1053, 7
      %v1055 = vsub.s32 6, %v1054
      %v1056 = vrot.slane %v1027, %v1055
      %v1057 = vlaneseq
      %v1058 = vshrl.u32 %v1057, 7
      %v1059 = vsub.s32 7, %v1058
      %v1060 = vrot.slane %v1027, %v1059
      %v1069 = vadd.f32 %v563, %v1032
      %v1070 = vadd.f32 %v565, %v1036
      %v1071 = vadd.f32 %v634, %v1040
      %v1072 = vadd.f32 %v1022, %v1044
      %v1073 = vadd.f32 %v1006, %v1048
      %v1074 = vadd.f32 %v1023, %v1052
      %v1075 = vadd.f32 %v1024, %v1056
      %v1076 = vadd.f32 %v1026, %v1060
      %1077 = vst [vmem:[%s361] sm:$0xff] %v1069
      %1078 = vst [vmem:[%s361 + $0x8] sm:$0xff] %v1070
      %1079 = vst [vmem:[%s361 + $0x10] sm:$0xff] %v1071
      %1080 = vst [vmem:[%s361 + $0x18] sm:$0xff] %v1072
      %1081 = vst [vmem:[%s361 + $0x20] sm:$0xff] %v1073
      %1082 = vst [vmem:[%s361 + $0x28] sm:$0xff] %v1074
      %1083 = vst [vmem:[%s361 + $0x30] sm:$0xff] %v1075
      %1084 = vst.msk [vmem:[%s361 + $0x38] sm:$0xff] %vm1005, %v1076
      %p1085 = scmp.lt.s32.totalorder %s23, 1
      %s1086 = scalar_select %p1085, %s23, 1
      %p1087 = scmp.lt.s32.totalorder %s24, 1
      %s1088 = scalar_select %p1087, %s24, 1
      %s1089 = smul.addr %s1088, 8
      %s1090 = smul.addr %s1086, 16
      %s1091 = sadd.s32 %s1089, %s1090
      %s1092 = smul.addr %s1091, 8
      %s1093 = scalar_lea.vmem %s8, %s1092
      // Predicated region
      $region53: #{bandsplit_forward.3} parent=51 // pred_check
        %p1094 = pneg %p231
      $region54: #{bandsplit_forward.3} parent=51 // pred_check_branch
        %1096 = sbr.rel (%p1094) target = $region56
      $region55: #{bandsplit_forward.3} parent=51 // pred_region
        _
      $region56: #{bandsplit_forward.3} parent=51 // pred_fallthru
        _
    $region52: #{bandsplit_forward.3} parent=5 // pred_fallthru
      _
    %p1097 = scmp.le.s32.totalorder 2, %s14
    // Predicated region
    $region57: #{bandsplit_forward.3} parent=5 // pred_check
      %p1098 = pneg %p1097
    $region58: #{bandsplit_forward.3} parent=5 // pred_check_branch
      %1100 = sbr.rel (%p1098) target = $region60
    $region59: #{bandsplit_forward.3} parent=5 // pred_region
      %s1101 = ssub.s32 %s14, 2
      // Predicated region
      $region61: #{bandsplit_forward.3} parent=59 // pred_check
        %p1102 = pneg %p237
      $region62: #{bandsplit_forward.3} parent=59 // pred_check_branch
        %1104 = sbr.rel (%p1102) target = $region64
      $region63: #{bandsplit_forward.3} parent=59 // pred_region
        %p1105 = scmp.lt.s32.totalorder %s25, 1
        %s1106 = scalar_select %p1105, %s25, 1
        %p1107 = scmp.lt.s32.totalorder %s26, 1
        %s1108 = scalar_select %p1107, %s26, 1
        %s1109 = smul.addr %s1108, 8
        %s1110 = smul.addr %s1106, 16
        %s1111 = sadd.s32 %s1109, %s1110
        %s1112 = smul.addr %s1111, 8
        %s1113 = scalar_lea.vmem %s8, %s1112
      $region64: #{bandsplit_forward.3} parent=59 // pred_fallthru
        _
    $region60: #{bandsplit_forward.3} parent=5 // pred_fallthru
      _
  $region6: #{bandsplit_forward.3} parent=0 // loop_footer
    %s18 = sadd.s32 1, %s14
  $region7: #{bandsplit_forward.3} parent=0 // loop_footer_branch
    %13 = sbr.rel target = $region3
  $region8: #{bandsplit_forward.3} parent=0 // loop_exit
    _

</llo_original>
